<compile_context>
chip_gen: v7x
topology: tpu7x:2x2x1
jax: 0.10.0
libtpu: 0.0.40
codegen_flags: <defaults>
</compile_context>

<pallas_src>
import functools

import jax
import jax.numpy as jnp
import numpy as np
from jax.experimental import pallas as pl
from jax.experimental.pallas import tpu as pltpu


def _round_up(v, m):
    return ((v + m - 1) // m) * m


def _num_tensorcores():
    """2 for dual-TensorCore chips (v4/v5p megacore, v7x), else 1."""
    try:
        kind = jax.devices()[0].device_kind.lower()
    except Exception:
        return 1
    for tag in ("v4", "v5p", "7x", "v7", "tpu7"):
        if tag in kind:
            return 2
    return 1


def _condensation_kernel(xp_ref, fold_ref, tbl_ref, att_ref, rep_ref, *,
                         radius_threshold, pid_col):
    """One grid step processes a (tile, P_pad) slab of the hit x pid matrix."""
    step = pl.program_id(1)

    @pl.when(step == 0)
    def _():
        att_ref[...] = jnp.zeros_like(att_ref)
        rep_ref[...] = jnp.zeros_like(rep_ref)

    xp = xp_ref[...]          # (T, K): [x_d, ||x||^2, 1, pid_col_idx, 0...]
    tbl = tbl_ref[...]        # (K, P): [-2*xa_d ; 1 ; ||xa||^2 ; 0...]

    # ||x_i - xa_p||^2 straight off the MXU: x_sq / xa_sq / the -2 factor are
    # folded into the K=8 contraction; the pid-index lane hits a zero table
    # row, so no VPU fixup of the matmul result is needed.
    norm_sq = jnp.dot(xp, tbl, preferred_element_type=jnp.float32,
                      precision=jax.lax.Precision.HIGHEST)        # (T, P)

    nclamp = jnp.maximum(norm_sq, 1e-8)           # clamp + eps fused (1 VALU op)
    dist = jnp.sqrt(nclamp)                       # EUP slot (free-ish)
    rep_pot = jnp.maximum(radius_threshold - dist, 0.0)

    # pid match: the hit carries the (float) column index of its pid (-1 when
    # it has none); the column side is just an iota, so no pid table row and
    # no float mask are ever materialized.
    pid_i = xp[:, pid_col:pid_col + 1].astype(jnp.int32)          # (T, 1)
    col = jax.lax.broadcasted_iota(jnp.int32, (1, tbl.shape[1]), 1)
    pid_eq = pid_i == col                                         # (T, P) bool

    att_m = jnp.where(pid_eq, nclamp, 0.0)
    rep_m = jnp.where(pid_eq, 0.0, rep_pot)

    # Row-fold on the MXU with the per-hit charges baked into the fold matrix:
    #   fold[r,     i] = q_i * mask_i * (i % 8 == r)   (attractive)
    #   fold[r + 8, i] = q_i          * (i % 8 == r)   (repulsive)
    # so the kernel never does a per-element q multiply nor a VPU row reduce.
    fold = fold_ref[...]                                          # (16, T)
    att_ref[...] += jnp.dot(fold[0:8, :], att_m,
                            preferred_element_type=jnp.float32,
                            precision=jax.lax.Precision.HIGHEST)
    rep_ref[...] += jnp.dot(fold[8:16, :], rep_m,
                            preferred_element_type=jnp.float32,
                            precision=jax.lax.Precision.HIGHEST)


def _condensation_loss_pallas(*, beta, x, particle_id, mask,
                              q_min, radius_threshold, tile_n=None):
    """Pallas implementation of `_condensation_loss`."""
    n, d = x.shape
    f32 = jnp.float32

    # ---- eager glue (dynamic shapes, no clean Pallas equivalent) -----------
    # TODO(synk): jnp.unique has a data-dependent output size, so this wrapper
    # runs eagerly; each distinct number of particles recompiles the kernel.
    particle_id = particle_id.astype(jnp.int32)
    pids = jnp.unique(particle_id[particle_id > 0])
    num_p = int(pids.shape[0])
    if num_p == 0:
        zero = jnp.zeros((), f32)
        return {"attractive": zero, "repulsive": zero}
    p_pad = max(128, _round_up(num_p, 128))

    q = jnp.arctanh(beta.astype(f32)) ** 2 + q_min                # (N,)

    # Condensation-point (alpha) selection via segment reductions: never
    # materializes an (N, P) matrix in HBM (the scalability lever for large
    # events).  Picks the first max-q hit of each pid, like argmax.
    col_of_hit = jnp.searchsorted(pids, particle_id)
    col_c = jnp.clip(col_of_hit, 0, num_p - 1)
    valid = (particle_id > 0) & (pids[col_c] == particle_id)
    seg = jnp.where(valid, col_c, num_p)                          # spare segment
    qmax = jax.ops.segment_max(q, seg, num_segments=num_p + 1)
    hit_ids = jnp.arange(n, dtype=jnp.int32)
    is_max = valid & (q >= qmax[seg])
    alphas = jax.ops.segment_min(jnp.where(is_max, hit_ids, n), seg,
                                 num_segments=num_p + 1)[:num_p]
    x_f = x.astype(f32)
    x_alphas = x_f[alphas]                                        # (P, D)
    q_alphas = q[alphas]                                          # (P,)

    # ---- packed per-hit block: [x, ||x||^2, 1, pid column index, 0...] -----
    k_main = _round_up(d + 3, 8)
    pid_col = d + 2
    x_sq = jnp.sum(x_f * x_f, axis=1, keepdims=True)              # (N, 1)
    hit_col = jnp.where(valid, col_c, -1).astype(f32)[:, None]    # (N, 1)
    xp = jnp.concatenate(
        [x_f, x_sq, jnp.ones((n, 1), f32), hit_col], axis=1)      # (N, d+3)
    if k_main > d + 3:
        xp = jnp.pad(xp, ((0, 0), (0, k_main - (d + 3))))

    # ---- single condensation-point broadcast table --------------------------
    tbl = jnp.zeros((k_main, p_pad), f32)
    tbl = tbl.at[:d, :num_p].set(-2.0 * x_alphas.T)
    tbl = tbl.at[d, :num_p].set(1.0)
    tbl = tbl.at[d + 1, :num_p].set(jnp.sum(x_alphas * x_alphas, axis=1))

    # ---- per-hit fold weights (row reduction + q multiply on the MXU) -------
    mask_f = mask.astype(f32)
    sel8 = (hit_ids % 8)[None, :] == jnp.arange(8, dtype=jnp.int32)[:, None]
    fold = jnp.concatenate([jnp.where(sel8, (q * mask_f)[None, :], 0.0),
                            jnp.where(sel8, q[None, :], 0.0)], axis=0)  # (16, N)

    # ---- generation-aware tiling / VMEM budget -------------------------------
    try:
        vmem_cap = int(pltpu.get_tpu_info().vmem_capacity_bytes)
    except Exception:
        vmem_cap = 64 * 1024 * 1024
    vmem_limit = int(max(32 << 20, min(vmem_cap // 2, 64 << 20)))
    if tile_n is None:
        # keep ~8 live (tile, p_pad) f32 temporaries under ~half the limit
        tile_n = (vmem_limit // 2) // (32 * p_pad)
    tile = _round_up(max(128, min(1024, int(tile_n))), 128)
    tile = min(tile, _round_up(n, 128))
    # TODO(synk): for very large P the pid axis should be tiled as well so the
    # (tile, P) temporaries stay within v7x's 64 MiB VMEM.

    total_steps = -(-n // tile)
    num_split = _num_tensorcores()
    if total_steps < 2:
        num_split = 1
    steps = -(-total_steps // num_split)
    n_pad = num_split * steps * tile
    pad = n_pad - n

    # Padded rows have fold weight 0, so they contribute exactly nothing.
    xp_p = jnp.pad(xp, ((0, pad), (0, 0)))
    fold_p = jnp.pad(fold, ((0, 0), (0, pad)))

    kernel = functools.partial(_condensation_kernel,
                               radius_threshold=float(radius_threshold),
                               pid_col=pid_col)

    def row_map(c, i):
        return (c * steps + i, 0)

    def fold_map(c, i):
        return (0, c * steps + i)

    def bcast_map(c, i):
        return (0, 0)

    att_cols, rep_cols = pl.pallas_call(
        kernel,
        out_shape=(jax.ShapeDtypeStruct((num_split * 8, p_pad), f32),
                   jax.ShapeDtypeStruct((num_split * 8, p_pad), f32)),
        grid=(num_split, steps),
        in_specs=[
            pl.BlockSpec((tile, k_main), row_map),      # packed hits
            pl.BlockSpec((16, tile), fold_map),         # fold weights (q*mask, q)
            pl.BlockSpec((k_main, p_pad), bcast_map),   # condensation points
        ],
        out_specs=(pl.BlockSpec((8, p_pad), lambda c, i: (c, 0)),
                   pl.BlockSpec((8, p_pad), lambda c, i: (c, 0))),
        compiler_params=pltpu.CompilerParams(
            # TODO(synk): on v7x verify the leading axis is sharded across both
            # TensorCores; if it serializes, switch to pltpu.CORE_PARALLEL.
            dimension_semantics=("parallel", "arbitrary"),
            vmem_limit_bytes=vmem_limit),
    )(xp_p, fold_p, tbl)

    # q_alpha is a per-column factor: apply it once on the tiny (P,) reduction
    # instead of per (hit, pid) element inside the kernel.
    qa_vec = jnp.zeros((p_pad,), f32).at[:num_p].set(q_alphas)
    n_masked = jnp.sum(mask_f)   # NaN when empty, matching the reference
    attractive = jnp.sum(jnp.sum(att_cols, axis=0) * qa_vec) / n_masked
    repulsive = jnp.sum(jnp.sum(rep_cols, axis=0) * qa_vec) / jnp.float32(n)
    return {"attractive": attractive, "repulsive": repulsive}


def potential_loss(*, beta, x, particle_id, reconstructable, track_params,
                   ec_hit_mask, q_min=0.01, radius_threshold=10.0,
                   attr_pt_thld=0.9):
    """Forward pass of `PotentialLoss`."""
    particle_id = particle_id[ec_hit_mask]
    reconstructable = reconstructable[ec_hit_mask]
    track_params = track_params[ec_hit_mask]
    mask = (reconstructable > 0) & (track_params > attr_pt_thld)
    return _condensation_loss_pallas(
        beta=beta, x=x, particle_id=particle_id, mask=mask,
        q_min=q_min, radius_threshold=radius_threshold)


# ---------------------------- pure-JAX reference ----------------------------
def _condensation_loss_ref(*, beta, x, particle_id, mask, q_min,
                           radius_threshold):
    pids = jnp.unique(particle_id[particle_id > 0])
    pid_masks = particle_id[:, None] == pids[None, :]
    q = jnp.arctanh(beta) ** 2 + q_min
    alphas = jnp.argmax(q[:, None] * pid_masks, axis=0)
    x_alphas = x[alphas].T
    q_alphas = q[alphas][None, None, :]
    diff = x[:, :, None] - x_alphas[None, :, :]
    norm_sq = jnp.sum(diff ** 2, axis=1)
    va = q[:, None] * pid_masks * (norm_sq * q_alphas)[0]
    vr = (q[:, None] * (~pid_masks)
          * (jax.nn.relu(radius_threshold - jnp.sqrt(norm_sq + 1e-8))
             * q_alphas)[0])
    return {"attractive": jnp.sum(jnp.mean(va[mask], axis=0)),
            "repulsive": jnp.sum(jnp.mean(vr, axis=0))}


if __name__ == "__main__":
    key = jax.random.PRNGKey(0)
    k_beta, k_x, k_pid, k_rec, k_pt = jax.random.split(key, 5)

    n_total = 64
    d_cluster = 3

    # deterministic EC hit mask: drop every 8th hit -> 56 selected hits
    ec_hit_mask = (jnp.arange(n_total) % 8) != 7
    n_sel = int(ec_hit_mask.sum())                      # 56

    beta = jax.random.uniform(k_beta, (n_sel,), minval=0.01, maxval=0.9,
                              dtype=jnp.float32)
    x = jax.random.normal(k_x, (n_sel, d_cluster), dtype=jnp.float32)
    particle_id = jax.random.randint(k_pid, (n_total,), 0, 8, dtype=jnp.int32)
    reconstructable = jax.random.randint(k_rec, (n_total,), 0, 2,
                                         dtype=jnp.int32).astype(jnp.float32)
    track_params = jax.random.uniform(k_pt, (n_total,), minval=0.0, maxval=2.0,
                                      dtype=jnp.float32)

    out = potential_loss(beta=beta, x=x, particle_id=particle_id,
                         reconstructable=reconstructable,
                         track_params=track_params, ec_hit_mask=ec_hit_mask)
    jax.block_until_ready(out)

    # reference check
    pid_s = particle_id[ec_hit_mask]
    rec_s = reconstructable[ec_hit_mask]
    pt_s = track_params[ec_hit_mask]
    mask = (rec_s > 0) & (pt_s > 0.9)
    ref = _condensation_loss_ref(beta=beta, x=x, particle_id=pid_s, mask=mask,
                                 q_min=0.01, radius_threshold=10.0)

    np.testing.assert_allclose(np.asarray(out["attractive"]),
                               np.asarray(ref["attractive"]),
                               rtol=1e-4, atol=1e-4)
    np.testing.assert_allclose(np.asarray(out["repulsive"]),
                               np.asarray(ref["repulsive"]),
                               rtol=1e-4, atol=1e-4)
    print("KERNEL_OK")
</pallas_src>

<mosaic_0001>
module attributes {stable_mosaic.version = 11 : i64} {
  func.func @_condensation_kernel(%arg0: i32, %arg1: i32, %arg2: memref<128x8xf32, #tpu.memory_space<vmem>>, %arg3: memref<16x128xf32, #tpu.memory_space<vmem>>, %arg4: memref<8x128xf32, #tpu.memory_space<vmem>>, %arg5: memref<8x128xf32, #tpu.memory_space<vmem>>, %arg6: memref<8x128xf32, #tpu.memory_space<vmem>>) attributes {dimension_semantics = [#tpu.dimension_semantics<parallel>, #tpu.dimension_semantics<arbitrary>], iteration_bounds = array<i64: 1, 1>, scalar_prefetch = 0 : i64, scratch_operands = 0 : i64, tpu.core_type = #tpu.core_type<tc>, window_params = [{transform_indices = @transform_0, window_bounds = array<i64: 128, 8>}, {transform_indices = @transform_1, window_bounds = array<i64: 16, 128>}, {pipeline_mode = #tpu.pipeline_mode<synchronous>, transform_indices = @transform_2, window_bounds = array<i64: 8, 128>}, {transform_indices = @transform_3, window_bounds = array<i64: 8, 128>}, {transform_indices = @transform_4, window_bounds = array<i64: 8, 128>}]} {
    %c0_i32 = arith.constant 0 : i32
    %0 = arith.cmpi eq, %arg1, %c0_i32 : i32
    %1 = arith.extui %0 : i1 to i32
    %c0_i32_0 = arith.constant 0 : i32
    %2 = arith.cmpi ne, %1, %c0_i32_0 : i32
    scf.if %2 {
      %cst_21 = arith.constant 0.000000e+00 : f32
      %34 = vector.broadcast %cst_21 : f32 to vector<8x128xf32>
      %c0_22 = arith.constant 0 : index
      %c0_23 = arith.constant 0 : index
      %35 = vector.load %arg5[%c0_22, %c0_23] : memref<8x128xf32, #tpu.memory_space<vmem>>, vector<8x128xf32>
      tpu.vector_store %arg5[%c0_22, %c0_23], %34 {strides = array<i32>} : memref<8x128xf32, #tpu.memory_space<vmem>>, vector<8x128xf32>,
      %cst_24 = arith.constant 0.000000e+00 : f32
      %36 = vector.broadcast %cst_24 : f32 to vector<8x128xf32>
      %c0_25 = arith.constant 0 : index
      %c0_26 = arith.constant 0 : index
      %37 = vector.load %arg6[%c0_25, %c0_26] : memref<8x128xf32, #tpu.memory_space<vmem>>, vector<8x128xf32>
      tpu.vector_store %arg6[%c0_25, %c0_26], %36 {strides = array<i32>} : memref<8x128xf32, #tpu.memory_space<vmem>>, vector<8x128xf32>,
    } else {
    }
    %c0 = arith.constant 0 : index
    %c0_1 = arith.constant 0 : index
    %3 = vector.load %arg2[%c0, %c0_1] : memref<128x8xf32, #tpu.memory_space<vmem>>, vector<128x8xf32>
    %c0_2 = arith.constant 0 : index
    %c0_3 = arith.constant 0 : index
    %4 = vector.load %arg4[%c0_2, %c0_3] : memref<8x128xf32, #tpu.memory_space<vmem>>, vector<8x128xf32>
    %cst = arith.constant dense<0.000000e+00> : vector<128x128xf32>
    %5 = tpu.matmul %3, %4, %cst {dimension_numbers = #tpu.dot_dimension_numbers<[1], [0], [0], [1], [0, 0, 1, 1], [], []>, precision = #tpu.contract_precision<fp32>} : vector<128x8xf32>, vector<8x128xf32>, vector<128x128xf32> -> vector<128x128xf32>
    %cst_4 = arith.constant 9.99999993E-9 : f32
    %6 = vector.broadcast %cst_4 : f32 to vector<128x128xf32>
    %7 = arith.maximumf %5, %6 : vector<128x128xf32>
    %8 = math.sqrt %7 : vector<128x128xf32>
    %cst_5 = arith.constant 1.000000e+01 : f32
    %9 = vector.broadcast %cst_5 : f32 to vector<128x128xf32>
    %10 = arith.subf %9, %8 : vector<128x128xf32>
    %cst_6 = arith.constant 0.000000e+00 : f32
    %11 = vector.broadcast %cst_6 : f32 to vector<128x128xf32>
    %12 = arith.maximumf %10, %11 : vector<128x128xf32>
    %13 = vector.extract_strided_slice %3 {offsets = [0, 5], sizes = [128, 1], strides = [1, 1]} : vector<128x8xf32> to vector<128x1xf32>
    %14 = arith.fptosi %13 : vector<128x1xf32> to vector<128x1xi32>
    %15 = tpu.iota {dimensions = array<i32: 1>} : vector<1x128xi32>
    %16 = vector.broadcast %14 : vector<128x1xi32> to vector<128x128xi32>
    %17 = vector.broadcast %15 : vector<1x128xi32> to vector<128x128xi32>
    %18 = arith.cmpi eq, %16, %17 : vector<128x128xi32>
    %cst_7 = arith.constant 0.000000e+00 : f32
    %19 = vector.broadcast %cst_7 : f32 to vector<128x128xf32>
    %20 = arith.select %18, %7, %19 : vector<128x128xi1>, vector<128x128xf32>
    %cst_8 = arith.constant 0.000000e+00 : f32
    %21 = vector.broadcast %cst_8 : f32 to vector<128x128xf32>
    %22 = arith.select %18, %21, %12 : vector<128x128xi1>, vector<128x128xf32>
    %c0_9 = arith.constant 0 : index
    %c0_10 = arith.constant 0 : index
    %23 = vector.load %arg3[%c0_9, %c0_10] : memref<16x128xf32, #tpu.memory_space<vmem>>, vector<16x128xf32>
    %c0_11 = arith.constant 0 : index
    %c0_12 = arith.constant 0 : index
    %24 = vector.load %arg5[%c0_11, %c0_12] : memref<8x128xf32, #tpu.memory_space<vmem>>, vector<8x128xf32>
    %25 = vector.extract_strided_slice %23 {offsets = [0, 0], sizes = [8, 128], strides = [1, 1]} : vector<16x128xf32> to vector<8x128xf32>
    %cst_13 = arith.constant dense<0.000000e+00> : vector<8x128xf32>
    %26 = tpu.matmul %25, %20, %cst_13 {dimension_numbers = #tpu.dot_dimension_numbers<[1], [0], [0], [1], [0, 0, 1, 1], [], []>, precision = #tpu.contract_precision<fp32>} : vector<8x128xf32>, vector<128x128xf32>, vector<8x128xf32> -> vector<8x128xf32>
    %27 = arith.addf %24, %26 : vector<8x128xf32>
    %c0_14 = arith.constant 0 : index
    %c0_15 = arith.constant 0 : index
    %28 = vector.load %arg5[%c0_14, %c0_15] : memref<8x128xf32, #tpu.memory_space<vmem>>, vector<8x128xf32>
    tpu.vector_store %arg5[%c0_14, %c0_15], %27 {strides = array<i32>} : memref<8x128xf32, #tpu.memory_space<vmem>>, vector<8x128xf32>,
    %c0_16 = arith.constant 0 : index
    %c0_17 = arith.constant 0 : index
    %29 = vector.load %arg6[%c0_16, %c0_17] : memref<8x128xf32, #tpu.memory_space<vmem>>, vector<8x128xf32>
    %30 = vector.extract_strided_slice %23 {offsets = [8, 0], sizes = [8, 128], strides = [1, 1]} : vector<16x128xf32> to vector<8x128xf32>
    %cst_18 = arith.constant dense<0.000000e+00> : vector<8x128xf32>
    %31 = tpu.matmul %30, %22, %cst_18 {dimension_numbers = #tpu.dot_dimension_numbers<[1], [0], [0], [1], [0, 0, 1, 1], [], []>, precision = #tpu.contract_precision<fp32>} : vector<8x128xf32>, vector<128x128xf32>, vector<8x128xf32> -> vector<8x128xf32>
    %32 = arith.addf %29, %31 : vector<8x128xf32>
    %c0_19 = arith.constant 0 : index
    %c0_20 = arith.constant 0 : index
    %33 = vector.load %arg6[%c0_19, %c0_20] : memref<8x128xf32, #tpu.memory_space<vmem>>, vector<8x128xf32>
    tpu.vector_store %arg6[%c0_19, %c0_20], %32 {strides = array<i32>} : memref<8x128xf32, #tpu.memory_space<vmem>>, vector<8x128xf32>,
    return
  }
  func.func @transform_0(%arg0: i32, %arg1: i32) -> (i32, i32) {
    %c1_i32 = arith.constant 1 : i32
    %0 = arith.muli %arg0, %c1_i32 : i32
    %1 = arith.addi %0, %arg1 : i32
    %c0_i32 = arith.constant 0 : i32
    %c0_i32_0 = arith.constant 0 : i32
    return %1, %c0_i32 : i32, i32
  }
  func.func @transform_1(%arg0: i32, %arg1: i32) -> (i32, i32) {
    %c1_i32 = arith.constant 1 : i32
    %0 = arith.muli %arg0, %c1_i32 : i32
    %1 = arith.addi %0, %arg1 : i32
    %c0_i32 = arith.constant 0 : i32
    %c0_i32_0 = arith.constant 0 : i32
    return %c0_i32, %1 : i32, i32
  }
  func.func @transform_2(%arg0: i32, %arg1: i32) -> (i32, i32) {
    %c0_i32 = arith.constant 0 : i32
    %c0_i32_0 = arith.constant 0 : i32
    %c0_i32_1 = arith.constant 0 : i32
    return %c0_i32, %c0_i32_0 : i32, i32
  }
  func.func @transform_3(%arg0: i32, %arg1: i32) -> (i32, i32) {
    %c0_i32 = arith.constant 0 : i32
    %c0_i32_0 = arith.constant 0 : i32
    return %arg0, %c0_i32 : i32, i32
  }
  func.func @transform_4(%arg0: i32, %arg1: i32) -> (i32, i32) {
    %c0_i32 = arith.constant 0 : i32
    %c0_i32_0 = arith.constant 0 : i32
    return %arg0, %c0_i32 : i32, i32
  }
}

</mosaic_0001>

<llo_original>
// kernel: tpu_custom_call.1
$region0: #{tpu_custom_call.1}
  #allocation0 [shape = 'u32[]', space=smem, size = 0x4, offset = 0x4, fixed_abs, tag = 'smem constant byte address 0x4 - core index']
  #allocation1 [shape = 'u32[144,128]{1,0:T(1,128)}', space=vmem, size = 0x12000, scoped, tag = 'internal scratch']
  %s0 = inlined_call_operand.vmem [shape: f32[128,8], index: 0, kind: input, shape index: {}]
  %s1 = inlined_call_operand.vmem [shape: f32[16,128], index: 1, kind: input, shape index: {}]
  %s2 = inlined_call_operand.vmem [shape: f32[8,128], index: 2, kind: input, shape index: {}]
  %s3 = inlined_call_operand.hbm [shape: f32[8,128], index: 3, kind: output, shape index: {0}]
  %s4 = inlined_call_operand.hbm [shape: f32[8,128], index: 4, kind: output, shape index: {1}]
  %5 = xla_tuple %s3, %s4
  %s6 = sld [smem:[#allocation0]]
  $region34: #{tpu_custom_call.1} parent=0
    _
  %s8 = ssub.s32 1, %s6
  %s9 = scalar_select 0, %s8, %s6
  $region1: #{tpu_custom_call.1} parent=0
    #allocation2 [shape = 'u8[4096]{0}', space=vmem, size = 0x1000, scoped, tag = 'output window, operand 0, single buffered']
    #allocation3 [shape = 's32[1]{0}', space=sflag, size = 0x4, scoped, tag = 'scoped memory for tpu_custom_call.1']
    #allocation4 [shape = 'u8[4096]{0}', space=vmem, size = 0x1000, scoped, tag = 'output window, operand 1, single buffered']
    #allocation5 [shape = 's32[1]{0}', space=sflag, size = 0x4, scoped, tag = 'scoped memory for tpu_custom_call.1']
    %10 = vsyncpa [#allocation3], 0
    %11 = vsyncpa [#allocation5], 0
    // Predicated region
    $region2: #{tpu_custom_call.1} parent=1 // pred_check
      _
    $region3: #{tpu_custom_call.1} parent=1 // pred_check_branch
      %13 = sbr.rel (0) target = $region5
    $region4: #{tpu_custom_call.1} parent=1 // pred_region
      %s14 = sadd.s32 0, 0
      %s15 = smul.u32 16, %s14
      %p16 = scmp.lt.s32.totalorder %s15, 15
      %s17 = scalar_select %p16, %s15, 15
      %s18 = smul.addr %s17, 8
      %s19 = scalar_lea.vmem %s0, %s18
      %s20 = sadd.s32 0, 0
      %s21 = smul.u32 16, %s20
    $region5: #{tpu_custom_call.1} parent=1 // pred_fallthru
      _
    // Predicated region
    $region6: #{tpu_custom_call.1} parent=1 // pred_check
      _
    $region7: #{tpu_custom_call.1} parent=1 // pred_check_branch
      %23 = sbr.rel (0) target = $region9
    $region8: #{tpu_custom_call.1} parent=1 // pred_region
      %s24 = sadd.s32 0, 0
      %p25 = scmp.lt.s32.totalorder %s24, 0
      %s26 = scalar_select %p25, %s24, 0
      %s27 = smul.addr %s26, 8
      %s28 = scalar_lea.vmem %s1, %s27
      %s29 = sadd.s32 0, 0
    $region9: #{tpu_custom_call.1} parent=1 // pred_fallthru
      _
    // Predicated region
    $region10: #{tpu_custom_call.1} parent=1 // pred_check
      _
    $region11: #{tpu_custom_call.1} parent=1 // pred_check_branch
      %31 = sbr.rel (0) target = $region13
    $region12: #{tpu_custom_call.1} parent=1 // pred_region
      _
    $region13: #{tpu_custom_call.1} parent=1 // pred_fallthru
      _
    %s32 = sadd.s32 0, 0
    %s33 = smul.u32 16, %s32
    %p34 = scmp.lt.s32.totalorder %s33, 15
    %s35 = scalar_select %p34, %s33, 15
    %s36 = smul.addr %s35, 8
    %s37 = scalar_lea.vmem %s0, %s36
    %s38 = sadd.s32 0, 0
    %p39 = scmp.lt.s32.totalorder %s38, 0
    %s40 = scalar_select %p39, %s38, 0
    %s41 = smul.addr %s40, 8
    %s42 = scalar_lea.vmem %s1, %s41
    %s43 = sadd.s32 0, 0
    %s44 = smul.u32 16, %s43
    %p45 = scmp.lt.s32.totalorder %s44, 15
    %s46 = scalar_select %p45, %s44, 15
    %s47 = smul.addr %s46, 8
    %s48 = scalar_lea.vmem %s0, %s47
    %s49 = sadd.s32 0, 0
    %s50 = smul.u32 16, %s49
    %s51 = sadd.s32 0, 0
    %p52 = scmp.lt.s32.totalorder %s51, 0
    %s53 = scalar_select %p52, %s51, 0
    %s54 = smul.addr %s53, 8
    %s55 = scalar_lea.vmem %s1, %s54
    %s56 = sadd.s32 0, 0
    %p57 = scmp.eq.s32.totalorder 0, 0
    // Predicated region
    $region14: #{tpu_custom_call.1} parent=1 // pred_check
      %p58 = pneg %p57
    $region15: #{tpu_custom_call.1} parent=1 // pred_check_branch
      %60 = sbr.rel (%p58) target = $region17
    $region16: #{tpu_custom_call.1} parent=1 // pred_region
      %61 = vst [vmem:[#allocation2] sm:$0xff] 0.0
      %62 = vst [vmem:[#allocation4] sm:$0xff] 0.0
    $region17: #{tpu_custom_call.1} parent=1 // pred_fallthru
      _
    %v63 = vld [vmem:[%s48] sm:$0xff]
    %v64 = vld [vmem:[%s48 + $0x8] sm:$0xff]
    %v65 = vld [vmem:[%s48 + $0x10] sm:$0xff]
    %v66 = vld [vmem:[%s48 + $0x18] sm:$0xff]
    %v67 = vld [vmem:[%s48 + $0x20] sm:$0xff]
    %v68 = vld [vmem:[%s48 + $0x28] sm:$0xff]
    %v69 = vld [vmem:[%s48 + $0x30] sm:$0xff]
    %v70 = vld [vmem:[%s48 + $0x38] sm:$0xff]
    %v71 = vld [vmem:[%s48 + $0x40] sm:$0xff]
    %v72 = vld [vmem:[%s48 + $0x48] sm:$0xff]
    %v73 = vld [vmem:[%s48 + $0x50] sm:$0xff]
    %v74 = vld [vmem:[%s48 + $0x58] sm:$0xff]
    %v75 = vld [vmem:[%s48 + $0x60] sm:$0xff]
    %v76 = vld [vmem:[%s48 + $0x68] sm:$0xff]
    %v77 = vld [vmem:[%s48 + $0x70] sm:$0xff]
    %v78 = vld [vmem:[%s48 + $0x78] sm:$0xff]
    %v79 = vld [vmem:[%s2] sm:$0xff]
    %vm80 = vcmask 64512
    %v82 = vsel %vm80, %v63, 0
    %v85 = vsel %vm80, %v64, 0
    %v88 = vsel %vm80, %v65, 0
    %v91 = vsel %vm80, %v66, 0
    %v94 = vsel %vm80, %v67, 0
    %v97 = vsel %vm80, %v68, 0
    %v100 = vsel %vm80, %v69, 0
    %v103 = vsel %vm80, %v70, 0
    %v106 = vsel %vm80, %v71, 0
    %v109 = vsel %vm80, %v72, 0
    %v112 = vsel %vm80, %v73, 0
    %v115 = vsel %vm80, %v74, 0
    %v118 = vsel %vm80, %v75, 0
    %v121 = vsel %vm80, %v76, 0
    %v124 = vsel %vm80, %v77, 0
    %v127 = vsel %vm80, %v78, 0
    %129 = vmatprep.subr.mxu0 0.0
    %v130 = vand.u32 %v79, 4294901760
    %131 = vmatpush1.msra.mxu0 %v130
    %132 = vmatprep.subr.mxu0 0.0
    %133 = vmatpush1.msra.mxu0 0.0
    %134 = vmatprep.subr.mxu0 0.0
    %135 = vmatpush1.msra.mxu0 0.0
    %136 = vmatprep.subr.mxu0 0.0
    %137 = vmatpush1.msra.mxu0 0.0
    %138 = vmatprep.subr.mxu0 0.0
    %139 = vmatpush1.msra.mxu0 0.0
    %140 = vmatprep.subr.mxu0 0.0
    %141 = vmatpush1.msra.mxu0 0.0
    %142 = vmatprep.subr.mxu0 0.0
    %143 = vmatpush1.msra.mxu0 0.0
    %144 = vmatprep.subr.mxu0 0.0
    %145 = vmatpush1.msra.mxu0 0.0
    %146 = vmatprep.subr.mxu0 0.0
    %147 = vmatpush1.msra.mxu0 0.0
    %148 = vmatprep.subr.mxu0 0.0
    %149 = vmatpush1.msra.mxu0 0.0
    %150 = vmatprep.subr.mxu0 0.0
    %151 = vmatpush1.msra.mxu0 0.0
    %152 = vmatprep.subr.mxu0 0.0
    %153 = vmatpush1.msra.mxu0 0.0
    %154 = vmatprep.subr.mxu0 0.0
    %155 = vmatpush1.msra.mxu0 0.0
    %156 = vmatprep.subr.mxu0 0.0
    %157 = vmatpush1.msra.mxu0 0.0
    %158 = vmatprep.subr.mxu0 0.0
    %159 = vmatpush1.msra.mxu0 0.0
    %160 = vmatprep.subr.mxu0 0.0
    %161 = vmatpush1.msra.mxu0 0.0
    %162 = vmatprep.subr.mxu0 0.0
    %163 = vmatpush1.msra.mxu0 0.0
    %164 = vmatprep.subr.mxu0 0.0
    %165 = vmatpush1.msra.mxu0 0.0
    %166 = vmatprep.subr.mxu0 0.0
    %167 = vmatpush1.msra.mxu0 0.0
    %168 = vmatprep.subr.mxu0 0.0
    %169 = vmatpush1.msra.mxu0 0.0
    %170 = vmatprep.subr.mxu0 0.0
    %171 = vmatpush1.msra.mxu0 0.0
    %172 = vmatprep.subr.mxu0 0.0
    %173 = vmatpush1.msra.mxu0 0.0
    %174 = vmatprep.subr.mxu0 0.0
    %175 = vmatpush1.msra.mxu0 0.0
    %176 = vmatprep.subr.mxu0 0.0
    %177 = vmatpush1.msra.mxu0 0.0
    %178 = vmatprep.subr.mxu0 0.0
    %179 = vmatpush1.msra.mxu0 0.0
    %180 = vmatprep.subr.mxu0 0.0
    %181 = vmatpush1.msra.mxu0 0.0
    %182 = vmatprep.subr.mxu0 0.0
    %183 = vmatpush1.msra.mxu0 0.0
    %184 = vmatprep.subr.mxu0 0.0
    %185 = vmatpush1.msra.mxu0 0.0
    %186 = vmatprep.subr.mxu0 0.0
    %187 = vmatpush1.msra.mxu0 0.0
    %188 = vmatprep.subr.mxu0 0.0
    %189 = vmatpush1.msra.mxu0 0.0
    %190 = vmatprep.subr.mxu0 0.0
    %191 = vmatpush1.msra.mxu0 0.0
    %192 = vmatprep.subr.mxu0 0.0
    %193 = vmatpush1.msra.mxu0 0.0
    %194 = vmatprep.mubr.f32.mxu0 0.0
    %v195 = vand.u32 %v82, 4294901760
    %v196 = vsub.f32 %v82, %v195
    %v197 = vand.u32 %v196, 4294901760
    %v198 = vsub.f32 %v196, %v197
    %v199 = vand.u32 %v198, 4294901760
    %200 = vmatmul.mubr.f32.gmra.mrb[0].mxu0 %v199
    %v201 = vpop.f32.mrb[0].mxu0
    %v202 = vadd.f32 0.0, %v201
    %v203 = vpop.f32.mrb[0].mxu0
    %204 = vmatprep.mubr.f32.mxu0 0.0
    %v205 = vand.u32 %v85, 4294901760
    %v206 = vsub.f32 %v85, %v205
    %v207 = vand.u32 %v206, 4294901760
    %v208 = vsub.f32 %v206, %v207
    %v209 = vand.u32 %v208, 4294901760
    %210 = vmatmul.mubr.f32.gmra.mrb[0].mxu0 %v209
    %v211 = vpop.f32.mrb[0].mxu0
    %v212 = vadd.f32 0.0, %v211
    %v213 = vpop.f32.mrb[0].mxu0
    %214 = vmatprep.mubr.f32.mxu0 0.0
    %v215 = vand.u32 %v88, 4294901760
    %v216 = vsub.f32 %v88, %v215
    %v217 = vand.u32 %v216, 4294901760
    %v218 = vsub.f32 %v216, %v217
    %v219 = vand.u32 %v218, 4294901760
    %220 = vmatmul.mubr.f32.gmra.mrb[0].mxu0 %v219
    %v221 = vpop.f32.mrb[0].mxu0
    %v222 = vadd.f32 0.0, %v221
    %v223 = vpop.f32.mrb[0].mxu0
    %224 = vmatprep.mubr.f32.mxu0 0.0
    %v225 = vand.u32 %v91, 4294901760
    %v226 = vsub.f32 %v91, %v225
    %v227 = vand.u32 %v226, 4294901760
    %v228 = vsub.f32 %v226, %v227
    %v229 = vand.u32 %v228, 4294901760
    %230 = vmatmul.mubr.f32.gmra.mrb[0].mxu0 %v229
    %v231 = vpop.f32.mrb[0].mxu0
    %v232 = vadd.f32 0.0, %v231
    %v233 = vpop.f32.mrb[0].mxu0
    %234 = vmatprep.mubr.f32.mxu0 0.0
    %v235 = vand.u32 %v94, 4294901760
    %v236 = vsub.f32 %v94, %v235
    %v237 = vand.u32 %v236, 4294901760
    %v238 = vsub.f32 %v236, %v237
    %v239 = vand.u32 %v238, 4294901760
    %240 = vmatmul.mubr.f32.gmra.mrb[0].mxu0 %v239
    %v241 = vpop.f32.mrb[0].mxu0
    %v242 = vadd.f32 0.0, %v241
    %v243 = vpop.f32.mrb[0].mxu0
    %244 = vmatprep.mubr.f32.mxu0 0.0
    %v245 = vand.u32 %v97, 4294901760
    %v246 = vsub.f32 %v97, %v245
    %v247 = vand.u32 %v246, 4294901760
    %v248 = vsub.f32 %v246, %v247
    %v249 = vand.u32 %v248, 4294901760
    %250 = vmatmul.mubr.f32.gmra.mrb[0].mxu0 %v249
    %v251 = vpop.f32.mrb[0].mxu0
    %v252 = vadd.f32 0.0, %v251
    %v253 = vpop.f32.mrb[0].mxu0
    %254 = vmatprep.mubr.f32.mxu0 0.0
    %v255 = vand.u32 %v100, 4294901760
    %v256 = vsub.f32 %v100, %v255
    %v257 = vand.u32 %v256, 4294901760
    %v258 = vsub.f32 %v256, %v257
    %v259 = vand.u32 %v258, 4294901760
    %260 = vmatmul.mubr.f32.gmra.mrb[0].mxu0 %v259
    %v261 = vpop.f32.mrb[0].mxu0
    %v262 = vadd.f32 0.0, %v261
    %v263 = vpop.f32.mrb[0].mxu0
    %264 = vmatprep.mubr.f32.mxu0 0.0
    %v265 = vand.u32 %v103, 4294901760
    %v266 = vsub.f32 %v103, %v265
    %v267 = vand.u32 %v266, 4294901760
    %v268 = vsub.f32 %v266, %v267
    %v269 = vand.u32 %v268, 4294901760
    %270 = vmatmul.mubr.f32.gmra.mrb[0].mxu0 %v269
    %v271 = vpop.f32.mrb[0].mxu0
    %v272 = vadd.f32 0.0, %v271
    %v273 = vpop.f32.mrb[0].mxu0
    %274 = vmatprep.mubr.f32.mxu0 0.0
    %v275 = vand.u32 %v106, 4294901760
    %v276 = vsub.f32 %v106, %v275
    %v277 = vand.u32 %v276, 4294901760
    %v278 = vsub.f32 %v276, %v277
    %v279 = vand.u32 %v278, 4294901760
    %280 = vmatmul.mubr.f32.gmra.mrb[0].mxu0 %v279
    %v281 = vpop.f32.mrb[0].mxu0
    %v282 = vadd.f32 0.0, %v281
    %v283 = vpop.f32.mrb[0].mxu0
    %284 = vmatprep.mubr.f32.mxu0 0.0
    %v285 = vand.u32 %v109, 4294901760
    %v286 = vsub.f32 %v109, %v285
    %v287 = vand.u32 %v286, 4294901760
    %v288 = vsub.f32 %v286, %v287
    %v289 = vand.u32 %v288, 4294901760
    %290 = vmatmul.mubr.f32.gmra.mrb[0].mxu0 %v289
    %v291 = vpop.f32.mrb[0].mxu0
    %v292 = vadd.f32 0.0, %v291
    %v293 = vpop.f32.mrb[0].mxu0
    %294 = vmatprep.mubr.f32.mxu0 0.0
    %v295 = vand.u32 %v112, 4294901760
    %v296 = vsub.f32 %v112, %v295
    %v297 = vand.u32 %v296, 4294901760
    %v298 = vsub.f32 %v296, %v297
    %v299 = vand.u32 %v298, 4294901760
    %300 = vmatmul.mubr.f32.gmra.mrb[0].mxu0 %v299
    %v301 = vpop.f32.mrb[0].mxu0
    %v302 = vadd.f32 0.0, %v301
    %v303 = vpop.f32.mrb[0].mxu0
    %304 = vmatprep.mubr.f32.mxu0 0.0
    %v305 = vand.u32 %v115, 4294901760
    %v306 = vsub.f32 %v115, %v305
    %v307 = vand.u32 %v306, 4294901760
    %v308 = vsub.f32 %v306, %v307
    %v309 = vand.u32 %v308, 4294901760
    %310 = vmatmul.mubr.f32.gmra.mrb[0].mxu0 %v309
    %v311 = vpop.f32.mrb[0].mxu0
    %v312 = vadd.f32 0.0, %v311
    %v313 = vpop.f32.mrb[0].mxu0
    %314 = vmatprep.mubr.f32.mxu0 0.0
    %v315 = vand.u32 %v118, 4294901760
    %v316 = vsub.f32 %v118, %v315
    %v317 = vand.u32 %v316, 4294901760
    %v318 = vsub.f32 %v316, %v317
    %v319 = vand.u32 %v318, 4294901760
    %320 = vmatmul.mubr.f32.gmra.mrb[0].mxu0 %v319
    %v321 = vpop.f32.mrb[0].mxu0
    %v322 = vadd.f32 0.0, %v321
    %v323 = vpop.f32.mrb[0].mxu0
    %324 = vmatprep.mubr.f32.mxu0 0.0
    %v325 = vand.u32 %v121, 4294901760
    %v326 = vsub.f32 %v121, %v325
    %v327 = vand.u32 %v326, 4294901760
    %v328 = vsub.f32 %v326, %v327
    %v329 = vand.u32 %v328, 4294901760
    %330 = vmatmul.mubr.f32.gmra.mrb[0].mxu0 %v329
    %v331 = vpop.f32.mrb[0].mxu0
    %v332 = vadd.f32 0.0, %v331
    %v333 = vpop.f32.mrb[0].mxu0
    %334 = vmatprep.mubr.f32.mxu0 0.0
    %v335 = vand.u32 %v124, 4294901760
    %v336 = vsub.f32 %v124, %v335
    %v337 = vand.u32 %v336, 4294901760
    %v338 = vsub.f32 %v336, %v337
    %v339 = vand.u32 %v338, 4294901760
    %340 = vmatmul.mubr.f32.gmra.mrb[0].mxu0 %v339
    %v341 = vpop.f32.mrb[0].mxu0
    %v342 = vadd.f32 0.0, %v341
    %v343 = vpop.f32.mrb[0].mxu0
    %344 = vmatprep.mubr.f32.mxu0 0.0
    %v345 = vand.u32 %v127, 4294901760
    %v346 = vsub.f32 %v127, %v345
    %v347 = vand.u32 %v346, 4294901760
    %v348 = vsub.f32 %v346, %v347
    %v349 = vand.u32 %v348, 4294901760
    %350 = vmatmul.mubr.f32.gmra.mrb[0].mxu0 %v349
    %v351 = vpop.f32.mrb[0].mxu0
    %v352 = vadd.f32 0.0, %v351
    %v353 = vpop.f32.mrb[0].mxu0
    %354 = vdwg.mxu0
    %355 = vmatprep.subr.mxu0 0.0
    %v356 = vand.u32 %v79, 4294901760
    %v357 = vsub.f32 %v79, %v356
    %v358 = vand.u32 %v357, 4294901760
    %v359 = vsub.f32 %v357, %v358
    %v360 = vand.u32 %v359, 4294901760
    %361 = vmatpush1.msra.mxu0 %v360
    %362 = vmatprep.subr.mxu0 0.0
    %363 = vmatpush1.msra.mxu0 0.0
    %364 = vmatprep.subr.mxu0 0.0
    %365 = vmatpush1.msra.mxu0 0.0
    %366 = vmatprep.subr.mxu0 0.0
    %367 = vmatpush1.msra.mxu0 0.0
    %368 = vmatprep.subr.mxu0 0.0
    %369 = vmatpush1.msra.mxu0 0.0
    %370 = vmatprep.subr.mxu0 0.0
    %371 = vmatpush1.msra.mxu0 0.0
    %372 = vmatprep.subr.mxu0 0.0
    %373 = vmatpush1.msra.mxu0 0.0
    %374 = vmatprep.subr.mxu0 0.0
    %375 = vmatpush1.msra.mxu0 0.0
    %376 = vmatprep.subr.mxu0 0.0
    %377 = vmatpush1.msra.mxu0 0.0
    %378 = vmatprep.subr.mxu0 0.0
    %379 = vmatpush1.msra.mxu0 0.0
    %380 = vmatprep.subr.mxu0 0.0
    %381 = vmatpush1.msra.mxu0 0.0
    %382 = vmatprep.subr.mxu0 0.0
    %383 = vmatpush1.msra.mxu0 0.0
    %384 = vmatprep.subr.mxu0 0.0
    %385 = vmatpush1.msra.mxu0 0.0
    %386 = vmatprep.subr.mxu0 0.0
    %387 = vmatpush1.msra.mxu0 0.0
    %388 = vmatprep.subr.mxu0 0.0
    %389 = vmatpush1.msra.mxu0 0.0
    %390 = vmatprep.subr.mxu0 0.0
    %391 = vmatpush1.msra.mxu0 0.0
    %392 = vmatprep.subr.mxu0 0.0
    %393 = vmatpush1.msra.mxu0 0.0
    %394 = vmatprep.subr.mxu0 0.0
    %395 = vmatpush1.msra.mxu0 0.0
    %396 = vmatprep.subr.mxu0 0.0
    %397 = vmatpush1.msra.mxu0 0.0
    %398 = vmatprep.subr.mxu0 0.0
    %399 = vmatpush1.msra.mxu0 0.0
    %400 = vmatprep.subr.mxu0 0.0
    %401 = vmatpush1.msra.mxu0 0.0
    %402 = vmatprep.subr.mxu0 0.0
    %403 = vmatpush1.msra.mxu0 0.0
    %404 = vmatprep.subr.mxu0 0.0
    %405 = vmatpush1.msra.mxu0 0.0
    %406 = vmatprep.subr.mxu0 0.0
    %407 = vmatpush1.msra.mxu0 0.0
    %408 = vmatprep.subr.mxu0 0.0
    %409 = vmatpush1.msra.mxu0 0.0
    %410 = vmatprep.subr.mxu0 0.0
    %411 = vmatpush1.msra.mxu0 0.0
    %412 = vmatprep.subr.mxu0 0.0
    %413 = vmatpush1.msra.mxu0 0.0
    %414 = vmatprep.subr.mxu0 0.0
    %415 = vmatpush1.msra.mxu0 0.0
    %416 = vmatprep.subr.mxu0 0.0
    %417 = vmatpush1.msra.mxu0 0.0
    %418 = vmatprep.subr.mxu0 0.0
    %419 = vmatpush1.msra.mxu0 0.0
    %420 = vmatprep.subr.mxu0 0.0
    %421 = vmatpush1.msra.mxu0 0.0
    %422 = vmatprep.subr.mxu0 0.0
    %423 = vmatpush1.msra.mxu0 0.0
    %424 = vmatprep.mubr.f32.mxu0 0.0
    %v425 = vand.u32 %v82, 4294901760
    %426 = vmatmul.mubr.f32.gmra.mrb[0].mxu0 %v425
    %v427 = vpop.f32.mrb[0].mxu0
    %v428 = vadd.f32 %v202, %v427
    %v429 = vpop.f32.mrb[0].mxu0
    %430 = vmatprep.mubr.f32.mxu0 0.0
    %v431 = vand.u32 %v85, 4294901760
    %432 = vmatmul.mubr.f32.gmra.mrb[0].mxu0 %v431
    %v433 = vpop.f32.mrb[0].mxu0
    %v434 = vadd.f32 %v212, %v433
    %v435 = vpop.f32.mrb[0].mxu0
    %436 = vmatprep.mubr.f32.mxu0 0.0
    %v437 = vand.u32 %v88, 4294901760
    %438 = vmatmul.mubr.f32.gmra.mrb[0].mxu0 %v437
    %v439 = vpop.f32.mrb[0].mxu0
    %v440 = vadd.f32 %v222, %v439
    %v441 = vpop.f32.mrb[0].mxu0
    %442 = vmatprep.mubr.f32.mxu0 0.0
    %v443 = vand.u32 %v91, 4294901760
    %444 = vmatmul.mubr.f32.gmra.mrb[0].mxu0 %v443
    %v445 = vpop.f32.mrb[0].mxu0
    %v446 = vadd.f32 %v232, %v445
    %v447 = vpop.f32.mrb[0].mxu0
    %448 = vmatprep.mubr.f32.mxu0 0.0
    %v449 = vand.u32 %v94, 4294901760
    %450 = vmatmul.mubr.f32.gmra.mrb[0].mxu0 %v449
    %v451 = vpop.f32.mrb[0].mxu0
    %v452 = vadd.f32 %v242, %v451
    %v453 = vpop.f32.mrb[0].mxu0
    %454 = vmatprep.mubr.f32.mxu0 0.0
    %v455 = vand.u32 %v97, 4294901760
    %456 = vmatmul.mubr.f32.gmra.mrb[0].mxu0 %v455
    %v457 = vpop.f32.mrb[0].mxu0
    %v458 = vadd.f32 %v252, %v457
    %v459 = vpop.f32.mrb[0].mxu0
    %460 = vmatprep.mubr.f32.mxu0 0.0
    %v461 = vand.u32 %v100, 4294901760
    %462 = vmatmul.mubr.f32.gmra.mrb[0].mxu0 %v461
    %v463 = vpop.f32.mrb[0].mxu0
    %v464 = vadd.f32 %v262, %v463
    %v465 = vpop.f32.mrb[0].mxu0
    %466 = vmatprep.mubr.f32.mxu0 0.0
    %v467 = vand.u32 %v103, 4294901760
    %468 = vmatmul.mubr.f32.gmra.mrb[0].mxu0 %v467
    %v469 = vpop.f32.mrb[0].mxu0
    %v470 = vadd.f32 %v272, %v469
    %v471 = vpop.f32.mrb[0].mxu0
    %472 = vmatprep.mubr.f32.mxu0 0.0
    %v473 = vand.u32 %v106, 4294901760
    %474 = vmatmul.mubr.f32.gmra.mrb[0].mxu0 %v473
    %v475 = vpop.f32.mrb[0].mxu0
    %v476 = vadd.f32 %v282, %v475
    %v477 = vpop.f32.mrb[0].mxu0
    %478 = vmatprep.mubr.f32.mxu0 0.0
    %v479 = vand.u32 %v109, 4294901760
    %480 = vmatmul.mubr.f32.gmra.mrb[0].mxu0 %v479
    %v481 = vpop.f32.mrb[0].mxu0
    %v482 = vadd.f32 %v292, %v481
    %v483 = vpop.f32.mrb[0].mxu0
    %484 = vmatprep.mubr.f32.mxu0 0.0
    %v485 = vand.u32 %v112, 4294901760
    %486 = vmatmul.mubr.f32.gmra.mrb[0].mxu0 %v485
    %v487 = vpop.f32.mrb[0].mxu0
    %v488 = vadd.f32 %v302, %v487
    %v489 = vpop.f32.mrb[0].mxu0
    %490 = vmatprep.mubr.f32.mxu0 0.0
    %v491 = vand.u32 %v115, 4294901760
    %492 = vmatmul.mubr.f32.gmra.mrb[0].mxu0 %v491
    %v493 = vpop.f32.mrb[0].mxu0
    %v494 = vadd.f32 %v312, %v493
    %v495 = vpop.f32.mrb[0].mxu0
    %496 = vmatprep.mubr.f32.mxu0 0.0
    %v497 = vand.u32 %v118, 4294901760
    %498 = vmatmul.mubr.f32.gmra.mrb[0].mxu0 %v497
    %v499 = vpop.f32.mrb[0].mxu0
    %v500 = vadd.f32 %v322, %v499
    %v501 = vpop.f32.mrb[0].mxu0
    %502 = vmatprep.mubr.f32.mxu0 0.0
    %v503 = vand.u32 %v121, 4294901760
    %504 = vmatmul.mubr.f32.gmra.mrb[0].mxu0 %v503
    %v505 = vpop.f32.mrb[0].mxu0
    %v506 = vadd.f32 %v332, %v505
    %v507 = vpop.f32.mrb[0].mxu0
    %508 = vmatprep.mubr.f32.mxu0 0.0
    %v509 = vand.u32 %v124, 4294901760
    %510 = vmatmul.mubr.f32.gmra.mrb[0].mxu0 %v509
    %v511 = vpop.f32.mrb[0].mxu0
    %v512 = vadd.f32 %v342, %v511
    %v513 = vpop.f32.mrb[0].mxu0
    %514 = vmatprep.mubr.f32.mxu0 0.0
    %v515 = vand.u32 %v127, 4294901760
    %516 = vmatmul.mubr.f32.gmra.mrb[0].mxu0 %v515
    %v517 = vpop.f32.mrb[0].mxu0
    %v518 = vadd.f32 %v352, %v517
    %v519 = vpop.f32.mrb[0].mxu0
    %520 = vdwg.mxu0
    %521 = vmatprep.subr.mxu0 0.0
    %v522 = vand.u32 %v79, 4294901760
    %v523 = vsub.f32 %v79, %v522
    %524 = vmatpush1.msra.mxu0 %v523
    %525 = vmatprep.subr.mxu0 0.0
    %526 = vmatpush1.msra.mxu0 0.0
    %527 = vmatprep.subr.mxu0 0.0
    %528 = vmatpush1.msra.mxu0 0.0
    %529 = vmatprep.subr.mxu0 0.0
    %530 = vmatpush1.msra.mxu0 0.0
    %531 = vmatprep.subr.mxu0 0.0
    %532 = vmatpush1.msra.mxu0 0.0
    %533 = vmatprep.subr.mxu0 0.0
    %534 = vmatpush1.msra.mxu0 0.0
    %535 = vmatprep.subr.mxu0 0.0
    %536 = vmatpush1.msra.mxu0 0.0
    %537 = vmatprep.subr.mxu0 0.0
    %538 = vmatpush1.msra.mxu0 0.0
    %539 = vmatprep.subr.mxu0 0.0
    %540 = vmatpush1.msra.mxu0 0.0
    %541 = vmatprep.subr.mxu0 0.0
    %542 = vmatpush1.msra.mxu0 0.0
    %543 = vmatprep.subr.mxu0 0.0
    %544 = vmatpush1.msra.mxu0 0.0
    %545 = vmatprep.subr.mxu0 0.0
    %546 = vmatpush1.msra.mxu0 0.0
    %547 = vmatprep.subr.mxu0 0.0
    %548 = vmatpush1.msra.mxu0 0.0
    %549 = vmatprep.subr.mxu0 0.0
    %550 = vmatpush1.msra.mxu0 0.0
    %551 = vmatprep.subr.mxu0 0.0
    %552 = vmatpush1.msra.mxu0 0.0
    %553 = vmatprep.subr.mxu0 0.0
    %554 = vmatpush1.msra.mxu0 0.0
    %555 = vmatprep.subr.mxu0 0.0
    %556 = vmatpush1.msra.mxu0 0.0
    %557 = vmatprep.subr.mxu0 0.0
    %558 = vmatpush1.msra.mxu0 0.0
    %559 = vmatprep.subr.mxu0 0.0
    %560 = vmatpush1.msra.mxu0 0.0
    %561 = vmatprep.subr.mxu0 0.0
    %562 = vmatpush1.msra.mxu0 0.0
    %563 = vmatprep.subr.mxu0 0.0
    %564 = vmatpush1.msra.mxu0 0.0
    %565 = vmatprep.subr.mxu0 0.0
    %566 = vmatpush1.msra.mxu0 0.0
    %567 = vmatprep.subr.mxu0 0.0
    %568 = vmatpush1.msra.mxu0 0.0
    %569 = vmatprep.subr.mxu0 0.0
    %570 = vmatpush1.msra.mxu0 0.0
    %571 = vmatprep.subr.mxu0 0.0
    %572 = vmatpush1.msra.mxu0 0.0
    %573 = vmatprep.subr.mxu0 0.0
    %574 = vmatpush1.msra.mxu0 0.0
    %575 = vmatprep.subr.mxu0 0.0
    %576 = vmatpush1.msra.mxu0 0.0
    %577 = vmatprep.subr.mxu0 0.0
    %578 = vmatpush1.msra.mxu0 0.0
    %579 = vmatprep.subr.mxu0 0.0
    %580 = vmatpush1.msra.mxu0 0.0
    %581 = vmatprep.subr.mxu0 0.0
    %582 = vmatpush1.msra.mxu0 0.0
    %583 = vmatprep.subr.mxu0 0.0
    %584 = vmatpush1.msra.mxu0 0.0
    %585 = vmatprep.subr.mxu0 0.0
    %586 = vmatpush1.msra.mxu0 0.0
    %587 = vmatprep.mubr.f32.mxu0 0.0
    %v588 = vand.u32 %v82, 4294901760
    %v589 = vsub.f32 %v82, %v588
    %590 = vmatmul.mubr.f32.gmra.mrb[0].mxu0 %v589
    %v591 = vpop.f32.mrb[0].mxu0
    %v592 = vadd.f32 %v428, %v591
    %v593 = vpop.f32.mrb[0].mxu0
    %594 = vmatprep.mubr.f32.mxu0 0.0
    %v595 = vand.u32 %v85, 4294901760
    %v596 = vsub.f32 %v85, %v595
    %597 = vmatmul.mubr.f32.gmra.mrb[0].mxu0 %v596
    %v598 = vpop.f32.mrb[0].mxu0
    %v599 = vadd.f32 %v434, %v598
    %v600 = vpop.f32.mrb[0].mxu0
    %601 = vmatprep.mubr.f32.mxu0 0.0
    %v602 = vand.u32 %v88, 4294901760
    %v603 = vsub.f32 %v88, %v602
    %604 = vmatmul.mubr.f32.gmra.mrb[0].mxu0 %v603
    %v605 = vpop.f32.mrb[0].mxu0
    %v606 = vadd.f32 %v440, %v605
    %v607 = vpop.f32.mrb[0].mxu0
    %608 = vmatprep.mubr.f32.mxu0 0.0
    %v609 = vand.u32 %v91, 4294901760
    %v610 = vsub.f32 %v91, %v609
    %611 = vmatmul.mubr.f32.gmra.mrb[0].mxu0 %v610
    %v612 = vpop.f32.mrb[0].mxu0
    %v613 = vadd.f32 %v446, %v612
    %v614 = vpop.f32.mrb[0].mxu0
    %615 = vmatprep.mubr.f32.mxu0 0.0
    %v616 = vand.u32 %v94, 4294901760
    %v617 = vsub.f32 %v94, %v616
    %618 = vmatmul.mubr.f32.gmra.mrb[0].mxu0 %v617
    %v619 = vpop.f32.mrb[0].mxu0
    %v620 = vadd.f32 %v452, %v619
    %v621 = vpop.f32.mrb[0].mxu0
    %622 = vmatprep.mubr.f32.mxu0 0.0
    %v623 = vand.u32 %v97, 4294901760
    %v624 = vsub.f32 %v97, %v623
    %625 = vmatmul.mubr.f32.gmra.mrb[0].mxu0 %v624
    %v626 = vpop.f32.mrb[0].mxu0
    %v627 = vadd.f32 %v458, %v626
    %v628 = vpop.f32.mrb[0].mxu0
    %629 = vmatprep.mubr.f32.mxu0 0.0
    %v630 = vand.u32 %v100, 4294901760
    %v631 = vsub.f32 %v100, %v630
    %632 = vmatmul.mubr.f32.gmra.mrb[0].mxu0 %v631
    %v633 = vpop.f32.mrb[0].mxu0
    %v634 = vadd.f32 %v464, %v633
    %v635 = vpop.f32.mrb[0].mxu0
    %636 = vmatprep.mubr.f32.mxu0 0.0
    %v637 = vand.u32 %v103, 4294901760
    %v638 = vsub.f32 %v103, %v637
    %639 = vmatmul.mubr.f32.gmra.mrb[0].mxu0 %v638
    %v640 = vpop.f32.mrb[0].mxu0
    %v641 = vadd.f32 %v470, %v640
    %v642 = vpop.f32.mrb[0].mxu0
    %643 = vmatprep.mubr.f32.mxu0 0.0
    %v644 = vand.u32 %v106, 4294901760
    %v645 = vsub.f32 %v106, %v644
    %646 = vmatmul.mubr.f32.gmra.mrb[0].mxu0 %v645
    %v647 = vpop.f32.mrb[0].mxu0
    %v648 = vadd.f32 %v476, %v647
    %v649 = vpop.f32.mrb[0].mxu0
    %650 = vmatprep.mubr.f32.mxu0 0.0
    %v651 = vand.u32 %v109, 4294901760
    %v652 = vsub.f32 %v109, %v651
    %653 = vmatmul.mubr.f32.gmra.mrb[0].mxu0 %v652
    %v654 = vpop.f32.mrb[0].mxu0
    %v655 = vadd.f32 %v482, %v654
    %v656 = vpop.f32.mrb[0].mxu0
    %657 = vmatprep.mubr.f32.mxu0 0.0
    %v658 = vand.u32 %v112, 4294901760
    %v659 = vsub.f32 %v112, %v658
    %660 = vmatmul.mubr.f32.gmra.mrb[0].mxu0 %v659
    %v661 = vpop.f32.mrb[0].mxu0
    %v662 = vadd.f32 %v488, %v661
    %v663 = vpop.f32.mrb[0].mxu0
    %664 = vmatprep.mubr.f32.mxu0 0.0
    %v665 = vand.u32 %v115, 4294901760
    %v666 = vsub.f32 %v115, %v665
    %667 = vmatmul.mubr.f32.gmra.mrb[0].mxu0 %v666
    %v668 = vpop.f32.mrb[0].mxu0
    %v669 = vadd.f32 %v494, %v668
    %v670 = vpop.f32.mrb[0].mxu0
    %671 = vmatprep.mubr.f32.mxu0 0.0
    %v672 = vand.u32 %v118, 4294901760
    %v673 = vsub.f32 %v118, %v672
    %674 = vmatmul.mubr.f32.gmra.mrb[0].mxu0 %v673
    %v675 = vpop.f32.mrb[0].mxu0
    %v676 = vadd.f32 %v500, %v675
    %v677 = vpop.f32.mrb[0].mxu0
    %678 = vmatprep.mubr.f32.mxu0 0.0
    %v679 = vand.u32 %v121, 4294901760
    %v680 = vsub.f32 %v121, %v679
    %681 = vmatmul.mubr.f32.gmra.mrb[0].mxu0 %v680
    %v682 = vpop.f32.mrb[0].mxu0
    %v683 = vadd.f32 %v506, %v682
    %v684 = vpop.f32.mrb[0].mxu0
    %685 = vmatprep.mubr.f32.mxu0 0.0
    %v686 = vand.u32 %v124, 4294901760
    %v687 = vsub.f32 %v124, %v686
    %688 = vmatmul.mubr.f32.gmra.mrb[0].mxu0 %v687
    %v689 = vpop.f32.mrb[0].mxu0
    %v690 = vadd.f32 %v512, %v689
    %v691 = vpop.f32.mrb[0].mxu0
    %692 = vmatprep.mubr.f32.mxu0 0.0
    %v693 = vand.u32 %v127, 4294901760
    %v694 = vsub.f32 %v127, %v693
    %695 = vmatmul.mubr.f32.gmra.mrb[0].mxu0 %v694
    %v696 = vpop.f32.mrb[0].mxu0
    %v697 = vadd.f32 %v518, %v696
    %v698 = vpop.f32.mrb[0].mxu0
    %699 = vdwg.mxu0
    %700 = vmatprep.subr.mxu0 0.0
    %v701 = vand.u32 %v79, 4294901760
    %702 = vmatpush1.msra.mxu0 %v701
    %703 = vmatprep.subr.mxu0 0.0
    %704 = vmatpush1.msra.mxu0 0.0
    %705 = vmatprep.subr.mxu0 0.0
    %706 = vmatpush1.msra.mxu0 0.0
    %707 = vmatprep.subr.mxu0 0.0
    %708 = vmatpush1.msra.mxu0 0.0
    %709 = vmatprep.subr.mxu0 0.0
    %710 = vmatpush1.msra.mxu0 0.0
    %711 = vmatprep.subr.mxu0 0.0
    %712 = vmatpush1.msra.mxu0 0.0
    %713 = vmatprep.subr.mxu0 0.0
    %714 = vmatpush1.msra.mxu0 0.0
    %715 = vmatprep.subr.mxu0 0.0
    %716 = vmatpush1.msra.mxu0 0.0
    %717 = vmatprep.subr.mxu0 0.0
    %718 = vmatpush1.msra.mxu0 0.0
    %719 = vmatprep.subr.mxu0 0.0
    %720 = vmatpush1.msra.mxu0 0.0
    %721 = vmatprep.subr.mxu0 0.0
    %722 = vmatpush1.msra.mxu0 0.0
    %723 = vmatprep.subr.mxu0 0.0
    %724 = vmatpush1.msra.mxu0 0.0
    %725 = vmatprep.subr.mxu0 0.0
    %726 = vmatpush1.msra.mxu0 0.0
    %727 = vmatprep.subr.mxu0 0.0
    %728 = vmatpush1.msra.mxu0 0.0
    %729 = vmatprep.subr.mxu0 0.0
    %730 = vmatpush1.msra.mxu0 0.0
    %731 = vmatprep.subr.mxu0 0.0
    %732 = vmatpush1.msra.mxu0 0.0
    %733 = vmatprep.subr.mxu0 0.0
    %734 = vmatpush1.msra.mxu0 0.0
    %735 = vmatprep.subr.mxu0 0.0
    %736 = vmatpush1.msra.mxu0 0.0
    %737 = vmatprep.subr.mxu0 0.0
    %738 = vmatpush1.msra.mxu0 0.0
    %739 = vmatprep.subr.mxu0 0.0
    %740 = vmatpush1.msra.mxu0 0.0
    %741 = vmatprep.subr.mxu0 0.0
    %742 = vmatpush1.msra.mxu0 0.0
    %743 = vmatprep.subr.mxu0 0.0
    %744 = vmatpush1.msra.mxu0 0.0
    %745 = vmatprep.subr.mxu0 0.0
    %746 = vmatpush1.msra.mxu0 0.0
    %747 = vmatprep.subr.mxu0 0.0
    %748 = vmatpush1.msra.mxu0 0.0
    %749 = vmatprep.subr.mxu0 0.0
    %750 = vmatpush1.msra.mxu0 0.0
    %751 = vmatprep.subr.mxu0 0.0
    %752 = vmatpush1.msra.mxu0 0.0
    %753 = vmatprep.subr.mxu0 0.0
    %754 = vmatpush1.msra.mxu0 0.0
    %755 = vmatprep.subr.mxu0 0.0
    %756 = vmatpush1.msra.mxu0 0.0
    %757 = vmatprep.subr.mxu0 0.0
    %758 = vmatpush1.msra.mxu0 0.0
    %759 = vmatprep.subr.mxu0 0.0
    %760 = vmatpush1.msra.mxu0 0.0
    %761 = vmatprep.subr.mxu0 0.0
    %762 = vmatpush1.msra.mxu0 0.0
    %763 = vmatprep.subr.mxu0 0.0
    %764 = vmatpush1.msra.mxu0 0.0
    %765 = vmatprep.mubr.f32.mxu0 0.0
    %v766 = vand.u32 %v82, 4294901760
    %v767 = vsub.f32 %v82, %v766
    %v768 = vand.u32 %v767, 4294901760
    %769 = vmatmul.mubr.f32.gmra.mrb[0].mxu0 %v768
    %v770 = vpop.f32.mrb[0].mxu0
    %v771 = vadd.f32 %v592, %v770
    %v772 = vpop.f32.mrb[0].mxu0
    %773 = vmatprep.mubr.f32.mxu0 0.0
    %v774 = vand.u32 %v85, 4294901760
    %v775 = vsub.f32 %v85, %v774
    %v776 = vand.u32 %v775, 4294901760
    %777 = vmatmul.mubr.f32.gmra.mrb[0].mxu0 %v776
    %v778 = vpop.f32.mrb[0].mxu0
    %v779 = vadd.f32 %v599, %v778
    %v780 = vpop.f32.mrb[0].mxu0
    %781 = vmatprep.mubr.f32.mxu0 0.0
    %v782 = vand.u32 %v88, 4294901760
    %v783 = vsub.f32 %v88, %v782
    %v784 = vand.u32 %v783, 4294901760
    %785 = vmatmul.mubr.f32.gmra.mrb[0].mxu0 %v784
    %v786 = vpop.f32.mrb[0].mxu0
    %v787 = vadd.f32 %v606, %v786
    %v788 = vpop.f32.mrb[0].mxu0
    %789 = vmatprep.mubr.f32.mxu0 0.0
    %v790 = vand.u32 %v91, 4294901760
    %v791 = vsub.f32 %v91, %v790
    %v792 = vand.u32 %v791, 4294901760
    %793 = vmatmul.mubr.f32.gmra.mrb[0].mxu0 %v792
    %v794 = vpop.f32.mrb[0].mxu0
    %v795 = vadd.f32 %v613, %v794
    %v796 = vpop.f32.mrb[0].mxu0
    %797 = vmatprep.mubr.f32.mxu0 0.0
    %v798 = vand.u32 %v94, 4294901760
    %v799 = vsub.f32 %v94, %v798
    %v800 = vand.u32 %v799, 4294901760
    %801 = vmatmul.mubr.f32.gmra.mrb[0].mxu0 %v800
    %v802 = vpop.f32.mrb[0].mxu0
    %v803 = vadd.f32 %v620, %v802
    %v804 = vpop.f32.mrb[0].mxu0
    %805 = vmatprep.mubr.f32.mxu0 0.0
    %v806 = vand.u32 %v97, 4294901760
    %v807 = vsub.f32 %v97, %v806
    %v808 = vand.u32 %v807, 4294901760
    %809 = vmatmul.mubr.f32.gmra.mrb[0].mxu0 %v808
    %v810 = vpop.f32.mrb[0].mxu0
    %v811 = vadd.f32 %v627, %v810
    %v812 = vpop.f32.mrb[0].mxu0
    %813 = vmatprep.mubr.f32.mxu0 0.0
    %v814 = vand.u32 %v100, 4294901760
    %v815 = vsub.f32 %v100, %v814
    %v816 = vand.u32 %v815, 4294901760
    %817 = vmatmul.mubr.f32.gmra.mrb[0].mxu0 %v816
    %v818 = vpop.f32.mrb[0].mxu0
    %v819 = vadd.f32 %v634, %v818
    %v820 = vpop.f32.mrb[0].mxu0
    %821 = vmatprep.mubr.f32.mxu0 0.0
    %v822 = vand.u32 %v103, 4294901760
    %v823 = vsub.f32 %v103, %v822
    %v824 = vand.u32 %v823, 4294901760
    %825 = vmatmul.mubr.f32.gmra.mrb[0].mxu0 %v824
    %v826 = vpop.f32.mrb[0].mxu0
    %v827 = vadd.f32 %v641, %v826
    %v828 = vpop.f32.mrb[0].mxu0
    %829 = vmatprep.mubr.f32.mxu0 0.0
    %v830 = vand.u32 %v106, 4294901760
    %v831 = vsub.f32 %v106, %v830
    %v832 = vand.u32 %v831, 4294901760
    %833 = vmatmul.mubr.f32.gmra.mrb[0].mxu0 %v832
    %v834 = vpop.f32.mrb[0].mxu0
    %v835 = vadd.f32 %v648, %v834
    %v836 = vpop.f32.mrb[0].mxu0
    %837 = vmatprep.mubr.f32.mxu0 0.0
    %v838 = vand.u32 %v109, 4294901760
    %v839 = vsub.f32 %v109, %v838
    %v840 = vand.u32 %v839, 4294901760
    %841 = vmatmul.mubr.f32.gmra.mrb[0].mxu0 %v840
    %v842 = vpop.f32.mrb[0].mxu0
    %v843 = vadd.f32 %v655, %v842
    %v844 = vpop.f32.mrb[0].mxu0
    %845 = vmatprep.mubr.f32.mxu0 0.0
    %v846 = vand.u32 %v112, 4294901760
    %v847 = vsub.f32 %v112, %v846
    %v848 = vand.u32 %v847, 4294901760
    %849 = vmatmul.mubr.f32.gmra.mrb[0].mxu0 %v848
    %v850 = vpop.f32.mrb[0].mxu0
    %v851 = vadd.f32 %v662, %v850
    %v852 = vpop.f32.mrb[0].mxu0
    %853 = vmatprep.mubr.f32.mxu0 0.0
    %v854 = vand.u32 %v115, 4294901760
    %v855 = vsub.f32 %v115, %v854
    %v856 = vand.u32 %v855, 4294901760
    %857 = vmatmul.mubr.f32.gmra.mrb[0].mxu0 %v856
    %v858 = vpop.f32.mrb[0].mxu0
    %v859 = vadd.f32 %v669, %v858
    %v860 = vpop.f32.mrb[0].mxu0
    %861 = vmatprep.mubr.f32.mxu0 0.0
    %v862 = vand.u32 %v118, 4294901760
    %v863 = vsub.f32 %v118, %v862
    %v864 = vand.u32 %v863, 4294901760
    %865 = vmatmul.mubr.f32.gmra.mrb[0].mxu0 %v864
    %v866 = vpop.f32.mrb[0].mxu0
    %v867 = vadd.f32 %v676, %v866
    %v868 = vpop.f32.mrb[0].mxu0
    %869 = vmatprep.mubr.f32.mxu0 0.0
    %v870 = vand.u32 %v121, 4294901760
    %v871 = vsub.f32 %v121, %v870
    %v872 = vand.u32 %v871, 4294901760
    %873 = vmatmul.mubr.f32.gmra.mrb[0].mxu0 %v872
    %v874 = vpop.f32.mrb[0].mxu0
    %v875 = vadd.f32 %v683, %v874
    %v876 = vpop.f32.mrb[0].mxu0
    %877 = vmatprep.mubr.f32.mxu0 0.0
    %v878 = vand.u32 %v124, 4294901760
    %v879 = vsub.f32 %v124, %v878
    %v880 = vand.u32 %v879, 4294901760
    %881 = vmatmul.mubr.f32.gmra.mrb[0].mxu0 %v880
    %v882 = vpop.f32.mrb[0].mxu0
    %v883 = vadd.f32 %v690, %v882
    %v884 = vpop.f32.mrb[0].mxu0
    %885 = vmatprep.mubr.f32.mxu0 0.0
    %v886 = vand.u32 %v127, 4294901760
    %v887 = vsub.f32 %v127, %v886
    %v888 = vand.u32 %v887, 4294901760
    %889 = vmatmul.mubr.f32.gmra.mrb[0].mxu0 %v888
    %v890 = vpop.f32.mrb[0].mxu0
    %v891 = vadd.f32 %v697, %v890
    %v892 = vpop.f32.mrb[0].mxu0
    %893 = vdwg.mxu0
    %894 = vmatprep.subr.mxu0 0.0
    %v895 = vand.u32 %v79, 4294901760
    %v896 = vsub.f32 %v79, %v895
    %v897 = vand.u32 %v896, 4294901760
    %898 = vmatpush1.msra.mxu0 %v897
    %899 = vmatprep.subr.mxu0 0.0
    %900 = vmatpush1.msra.mxu0 0.0
    %901 = vmatprep.subr.mxu0 0.0
    %902 = vmatpush1.msra.mxu0 0.0
    %903 = vmatprep.subr.mxu0 0.0
    %904 = vmatpush1.msra.mxu0 0.0
    %905 = vmatprep.subr.mxu0 0.0
    %906 = vmatpush1.msra.mxu0 0.0
    %907 = vmatprep.subr.mxu0 0.0
    %908 = vmatpush1.msra.mxu0 0.0
    %909 = vmatprep.subr.mxu0 0.0
    %910 = vmatpush1.msra.mxu0 0.0
    %911 = vmatprep.subr.mxu0 0.0
    %912 = vmatpush1.msra.mxu0 0.0
    %913 = vmatprep.subr.mxu0 0.0
    %914 = vmatpush1.msra.mxu0 0.0
    %915 = vmatprep.subr.mxu0 0.0
    %916 = vmatpush1.msra.mxu0 0.0
    %917 = vmatprep.subr.mxu0 0.0
    %918 = vmatpush1.msra.mxu0 0.0
    %919 = vmatprep.subr.mxu0 0.0
    %920 = vmatpush1.msra.mxu0 0.0
    %921 = vmatprep.subr.mxu0 0.0
    %922 = vmatpush1.msra.mxu0 0.0
    %923 = vmatprep.subr.mxu0 0.0
    %924 = vmatpush1.msra.mxu0 0.0
    %925 = vmatprep.subr.mxu0 0.0
    %926 = vmatpush1.msra.mxu0 0.0
    %927 = vmatprep.subr.mxu0 0.0
    %928 = vmatpush1.msra.mxu0 0.0
    %929 = vmatprep.subr.mxu0 0.0
    %930 = vmatpush1.msra.mxu0 0.0
    %931 = vmatprep.subr.mxu0 0.0
    %932 = vmatpush1.msra.mxu0 0.0
    %933 = vmatprep.subr.mxu0 0.0
    %934 = vmatpush1.msra.mxu0 0.0
    %935 = vmatprep.subr.mxu0 0.0
    %936 = vmatpush1.msra.mxu0 0.0
    %937 = vmatprep.subr.mxu0 0.0
    %938 = vmatpush1.msra.mxu0 0.0
    %939 = vmatprep.subr.mxu0 0.0
    %940 = vmatpush1.msra.mxu0 0.0
    %941 = vmatprep.subr.mxu0 0.0
    %942 = vmatpush1.msra.mxu0 0.0
    %943 = vmatprep.subr.mxu0 0.0
    %944 = vmatpush1.msra.mxu0 0.0
    %945 = vmatprep.subr.mxu0 0.0
    %946 = vmatpush1.msra.mxu0 0.0
    %947 = vmatprep.subr.mxu0 0.0
    %948 = vmatpush1.msra.mxu0 0.0
    %949 = vmatprep.subr.mxu0 0.0
    %950 = vmatpush1.msra.mxu0 0.0
    %951 = vmatprep.subr.mxu0 0.0
    %952 = vmatpush1.msra.mxu0 0.0
    %953 = vmatprep.subr.mxu0 0.0
    %954 = vmatpush1.msra.mxu0 0.0
    %955 = vmatprep.subr.mxu0 0.0
    %956 = vmatpush1.msra.mxu0 0.0
    %957 = vmatprep.subr.mxu0 0.0
    %958 = vmatpush1.msra.mxu0 0.0
    %959 = vmatprep.subr.mxu0 0.0
    %960 = vmatpush1.msra.mxu0 0.0
    %961 = vmatprep.mubr.f32.mxu0 0.0
    %v962 = vand.u32 %v82, 4294901760
    %963 = vmatmul.mubr.f32.gmra.mrb[0].mxu0 %v962
    %v964 = vpop.f32.mrb[0].mxu0
    %v965 = vadd.f32 %v771, %v964
    %v966 = vpop.f32.mrb[0].mxu0
    %967 = vmatprep.mubr.f32.mxu0 0.0
    %v968 = vand.u32 %v85, 4294901760
    %969 = vmatmul.mubr.f32.gmra.mrb[0].mxu0 %v968
    %v970 = vpop.f32.mrb[0].mxu0
    %v971 = vadd.f32 %v779, %v970
    %v972 = vpop.f32.mrb[0].mxu0
    %973 = vmatprep.mubr.f32.mxu0 0.0
    %v974 = vand.u32 %v88, 4294901760
    %975 = vmatmul.mubr.f32.gmra.mrb[0].mxu0 %v974
    %v976 = vpop.f32.mrb[0].mxu0
    %v977 = vadd.f32 %v787, %v976
    %v978 = vpop.f32.mrb[0].mxu0
    %979 = vmatprep.mubr.f32.mxu0 0.0
    %v980 = vand.u32 %v91, 4294901760
    %981 = vmatmul.mubr.f32.gmra.mrb[0].mxu0 %v980
    %v982 = vpop.f32.mrb[0].mxu0
    %v983 = vadd.f32 %v795, %v982
    %v984 = vpop.f32.mrb[0].mxu0
    %985 = vmatprep.mubr.f32.mxu0 0.0
    %v986 = vand.u32 %v94, 4294901760
    %987 = vmatmul.mubr.f32.gmra.mrb[0].mxu0 %v986
    %v988 = vpop.f32.mrb[0].mxu0
    %v989 = vadd.f32 %v803, %v988
    %v990 = vpop.f32.mrb[0].mxu0
    %991 = vmatprep.mubr.f32.mxu0 0.0
    %v992 = vand.u32 %v97, 4294901760
    %993 = vmatmul.mubr.f32.gmra.mrb[0].mxu0 %v992
    %v994 = vpop.f32.mrb[0].mxu0
    %v995 = vadd.f32 %v811, %v994
    %v996 = vpop.f32.mrb[0].mxu0
    %997 = vmatprep.mubr.f32.mxu0 0.0
    %v998 = vand.u32 %v100, 4294901760
    %999 = vmatmul.mubr.f32.gmra.mrb[0].mxu0 %v998
    %v1000 = vpop.f32.mrb[0].mxu0
    %v1001 = vadd.f32 %v819, %v1000
    %v1002 = vpop.f32.mrb[0].mxu0
    %1003 = vmatprep.mubr.f32.mxu0 0.0
    %v1004 = vand.u32 %v103, 4294901760
    %1005 = vmatmul.mubr.f32.gmra.mrb[0].mxu0 %v1004
    %v1006 = vpop.f32.mrb[0].mxu0
    %v1007 = vadd.f32 %v827, %v1006
    %v1008 = vpop.f32.mrb[0].mxu0
    %1009 = vmatprep.mubr.f32.mxu0 0.0
    %v1010 = vand.u32 %v106, 4294901760
    %1011 = vmatmul.mubr.f32.gmra.mrb[0].mxu0 %v1010
    %v1012 = vpop.f32.mrb[0].mxu0
    %v1013 = vadd.f32 %v835, %v1012
    %v1014 = vpop.f32.mrb[0].mxu0
    %1015 = vmatprep.mubr.f32.mxu0 0.0
    %v1016 = vand.u32 %v109, 4294901760
    %1017 = vmatmul.mubr.f32.gmra.mrb[0].mxu0 %v1016
    %v1018 = vpop.f32.mrb[0].mxu0
    %v1019 = vadd.f32 %v843, %v1018
    %v1020 = vpop.f32.mrb[0].mxu0
    %1021 = vmatprep.mubr.f32.mxu0 0.0
    %v1022 = vand.u32 %v112, 4294901760
    %1023 = vmatmul.mubr.f32.gmra.mrb[0].mxu0 %v1022
    %v1024 = vpop.f32.mrb[0].mxu0
    %v1025 = vadd.f32 %v851, %v1024
    %v1026 = vpop.f32.mrb[0].mxu0
    %1027 = vmatprep.mubr.f32.mxu0 0.0
    %v1028 = vand.u32 %v115, 4294901760
    %1029 = vmatmul.mubr.f32.gmra.mrb[0].mxu0 %v1028
    %v1030 = vpop.f32.mrb[0].mxu0
    %v1031 = vadd.f32 %v859, %v1030
    %v1032 = vpop.f32.mrb[0].mxu0
    %1033 = vmatprep.mubr.f32.mxu0 0.0
    %v1034 = vand.u32 %v118, 4294901760
    %1035 = vmatmul.mubr.f32.gmra.mrb[0].mxu0 %v1034
    %v1036 = vpop.f32.mrb[0].mxu0
    %v1037 = vadd.f32 %v867, %v1036
    %v1038 = vpop.f32.mrb[0].mxu0
    %1039 = vmatprep.mubr.f32.mxu0 0.0
    %v1040 = vand.u32 %v121, 4294901760
    %1041 = vmatmul.mubr.f32.gmra.mrb[0].mxu0 %v1040
    %v1042 = vpop.f32.mrb[0].mxu0
    %v1043 = vadd.f32 %v875, %v1042
    %v1044 = vpop.f32.mrb[0].mxu0
    %1045 = vmatprep.mubr.f32.mxu0 0.0
    %v1046 = vand.u32 %v124, 4294901760
    %1047 = vmatmul.mubr.f32.gmra.mrb[0].mxu0 %v1046
    %v1048 = vpop.f32.mrb[0].mxu0
    %v1049 = vadd.f32 %v883, %v1048
    %v1050 = vpop.f32.mrb[0].mxu0
    %1051 = vmatprep.mubr.f32.mxu0 0.0
    %v1052 = vand.u32 %v127, 4294901760
    %1053 = vmatmul.mubr.f32.gmra.mrb[0].mxu0 %v1052
    %v1054 = vpop.f32.mrb[0].mxu0
    %v1055 = vadd.f32 %v891, %v1054
    %v1056 = vpop.f32.mrb[0].mxu0
    %1057 = vdwg.mxu0
    %1058 = vmatprep.subr.mxu0 0.0
    %v1059 = vand.u32 %v79, 4294901760
    %1060 = vmatpush1.msra.mxu0 %v1059
    %1061 = vmatprep.subr.mxu0 0.0
    %1062 = vmatpush1.msra.mxu0 0.0
    %1063 = vmatprep.subr.mxu0 0.0
    %1064 = vmatpush1.msra.mxu0 0.0
    %1065 = vmatprep.subr.mxu0 0.0
    %1066 = vmatpush1.msra.mxu0 0.0
    %1067 = vmatprep.subr.mxu0 0.0
    %1068 = vmatpush1.msra.mxu0 0.0
    %1069 = vmatprep.subr.mxu0 0.0
    %1070 = vmatpush1.msra.mxu0 0.0
    %1071 = vmatprep.subr.mxu0 0.0
    %1072 = vmatpush1.msra.mxu0 0.0
    %1073 = vmatprep.subr.mxu0 0.0
    %1074 = vmatpush1.msra.mxu0 0.0
    %1075 = vmatprep.subr.mxu0 0.0
    %1076 = vmatpush1.msra.mxu0 0.0
    %1077 = vmatprep.subr.mxu0 0.0
    %1078 = vmatpush1.msra.mxu0 0.0
    %1079 = vmatprep.subr.mxu0 0.0
    %1080 = vmatpush1.msra.mxu0 0.0
    %1081 = vmatprep.subr.mxu0 0.0
    %1082 = vmatpush1.msra.mxu0 0.0
    %1083 = vmatprep.subr.mxu0 0.0
    %1084 = vmatpush1.msra.mxu0 0.0
    %1085 = vmatprep.subr.mxu0 0.0
    %1086 = vmatpush1.msra.mxu0 0.0
    %1087 = vmatprep.subr.mxu0 0.0
    %1088 = vmatpush1.msra.mxu0 0.0
    %1089 = vmatprep.subr.mxu0 0.0
    %1090 = vmatpush1.msra.mxu0 0.0
    %1091 = vmatprep.subr.mxu0 0.0
    %1092 = vmatpush1.msra.mxu0 0.0
    %1093 = vmatprep.subr.mxu0 0.0
    %1094 = vmatpush1.msra.mxu0 0.0
    %1095 = vmatprep.subr.mxu0 0.0
    %1096 = vmatpush1.msra.mxu0 0.0
    %1097 = vmatprep.subr.mxu0 0.0
    %1098 = vmatpush1.msra.mxu0 0.0
    %1099 = vmatprep.subr.mxu0 0.0
    %1100 = vmatpush1.msra.mxu0 0.0
    %1101 = vmatprep.subr.mxu0 0.0
    %1102 = vmatpush1.msra.mxu0 0.0
    %1103 = vmatprep.subr.mxu0 0.0
    %1104 = vmatpush1.msra.mxu0 0.0
    %1105 = vmatprep.subr.mxu0 0.0
    %1106 = vmatpush1.msra.mxu0 0.0
    %1107 = vmatprep.subr.mxu0 0.0
    %1108 = vmatpush1.msra.mxu0 0.0
    %1109 = vmatprep.subr.mxu0 0.0
    %1110 = vmatpush1.msra.mxu0 0.0
    %1111 = vmatprep.subr.mxu0 0.0
    %1112 = vmatpush1.msra.mxu0 0.0
    %1113 = vmatprep.subr.mxu0 0.0
    %1114 = vmatpush1.msra.mxu0 0.0
    %1115 = vmatprep.subr.mxu0 0.0
    %1116 = vmatpush1.msra.mxu0 0.0
    %1117 = vmatprep.subr.mxu0 0.0
    %1118 = vmatpush1.msra.mxu0 0.0
    %1119 = vmatprep.subr.mxu0 0.0
    %1120 = vmatpush1.msra.mxu0 0.0
    %1121 = vmatprep.subr.mxu0 0.0
    %1122 = vmatpush1.msra.mxu0 0.0
    %1123 = vmatprep.mubr.f32.mxu0 0.0
    %v1124 = vand.u32 %v82, 4294901760
    %1125 = vmatmul.mubr.f32.gmra.mrb[0].mxu0 %v1124
    %v1126 = vpop.f32.mrb[0].mxu0
    %v1127 = vadd.f32 %v965, %v1126
    %v1128 = vpop.f32.mrb[0].mxu0
    %1129 = vmatprep.mubr.f32.mxu0 0.0
    %v1130 = vand.u32 %v85, 4294901760
    %1131 = vmatmul.mubr.f32.gmra.mrb[0].mxu0 %v1130
    %v1132 = vpop.f32.mrb[0].mxu0
    %v1133 = vadd.f32 %v971, %v1132
    %v1134 = vpop.f32.mrb[0].mxu0
    %1135 = vmatprep.mubr.f32.mxu0 0.0
    %v1136 = vand.u32 %v88, 4294901760
    %1137 = vmatmul.mubr.f32.gmra.mrb[0].mxu0 %v1136
    %v1138 = vpop.f32.mrb[0].mxu0
    %v1139 = vadd.f32 %v977, %v1138
    %v1140 = vpop.f32.mrb[0].mxu0
    %1141 = vmatprep.mubr.f32.mxu0 0.0
    %v1142 = vand.u32 %v91, 4294901760
    %1143 = vmatmul.mubr.f32.gmra.mrb[0].mxu0 %v1142
    %v1144 = vpop.f32.mrb[0].mxu0
    %v1145 = vadd.f32 %v983, %v1144
    %v1146 = vpop.f32.mrb[0].mxu0
    %1147 = vmatprep.mubr.f32.mxu0 0.0
    %v1148 = vand.u32 %v94, 4294901760
    %1149 = vmatmul.mubr.f32.gmra.mrb[0].mxu0 %v1148
    %v1150 = vpop.f32.mrb[0].mxu0
    %v1151 = vadd.f32 %v989, %v1150
    %v1152 = vpop.f32.mrb[0].mxu0
    %1153 = vmatprep.mubr.f32.mxu0 0.0
    %v1154 = vand.u32 %v97, 4294901760
    %1155 = vmatmul.mubr.f32.gmra.mrb[0].mxu0 %v1154
    %v1156 = vpop.f32.mrb[0].mxu0
    %v1157 = vadd.f32 %v995, %v1156
    %v1158 = vpop.f32.mrb[0].mxu0
    %1159 = vmatprep.mubr.f32.mxu0 0.0
    %v1160 = vand.u32 %v100, 4294901760
    %1161 = vmatmul.mubr.f32.gmra.mrb[0].mxu0 %v1160
    %v1162 = vpop.f32.mrb[0].mxu0
    %v1163 = vadd.f32 %v1001, %v1162
    %v1164 = vpop.f32.mrb[0].mxu0
    %1165 = vmatprep.mubr.f32.mxu0 0.0
    %v1166 = vand.u32 %v103, 4294901760
    %1167 = vmatmul.mubr.f32.gmra.mrb[0].mxu0 %v1166
    %v1168 = vpop.f32.mrb[0].mxu0
    %v1169 = vadd.f32 %v1007, %v1168
    %v1170 = vpop.f32.mrb[0].mxu0
    %1171 = vmatprep.mubr.f32.mxu0 0.0
    %v1172 = vand.u32 %v106, 4294901760
    %1173 = vmatmul.mubr.f32.gmra.mrb[0].mxu0 %v1172
    %v1174 = vpop.f32.mrb[0].mxu0
    %v1175 = vadd.f32 %v1013, %v1174
    %v1176 = vpop.f32.mrb[0].mxu0
    %1177 = vmatprep.mubr.f32.mxu0 0.0
    %v1178 = vand.u32 %v109, 4294901760
    %1179 = vmatmul.mubr.f32.gmra.mrb[0].mxu0 %v1178
    %v1180 = vpop.f32.mrb[0].mxu0
    %v1181 = vadd.f32 %v1019, %v1180
    %v1182 = vpop.f32.mrb[0].mxu0
    %1183 = vmatprep.mubr.f32.mxu0 0.0
    %v1184 = vand.u32 %v112, 4294901760
    %1185 = vmatmul.mubr.f32.gmra.mrb[0].mxu0 %v1184
    %v1186 = vpop.f32.mrb[0].mxu0
    %v1187 = vadd.f32 %v1025, %v1186
    %v1188 = vpop.f32.mrb[0].mxu0
    %1189 = vmatprep.mubr.f32.mxu0 0.0
    %v1190 = vand.u32 %v115, 4294901760
    %1191 = vmatmul.mubr.f32.gmra.mrb[0].mxu0 %v1190
    %v1192 = vpop.f32.mrb[0].mxu0
    %v1193 = vadd.f32 %v1031, %v1192
    %v1194 = vpop.f32.mrb[0].mxu0
    %1195 = vmatprep.mubr.f32.mxu0 0.0
    %v1196 = vand.u32 %v118, 4294901760
    %1197 = vmatmul.mubr.f32.gmra.mrb[0].mxu0 %v1196
    %v1198 = vpop.f32.mrb[0].mxu0
    %v1199 = vadd.f32 %v1037, %v1198
    %v1200 = vpop.f32.mrb[0].mxu0
    %1201 = vmatprep.mubr.f32.mxu0 0.0
    %v1202 = vand.u32 %v121, 4294901760
    %1203 = vmatmul.mubr.f32.gmra.mrb[0].mxu0 %v1202
    %v1204 = vpop.f32.mrb[0].mxu0
    %v1205 = vadd.f32 %v1043, %v1204
    %v1206 = vpop.f32.mrb[0].mxu0
    %1207 = vmatprep.mubr.f32.mxu0 0.0
    %v1208 = vand.u32 %v124, 4294901760
    %1209 = vmatmul.mubr.f32.gmra.mrb[0].mxu0 %v1208
    %v1210 = vpop.f32.mrb[0].mxu0
    %v1211 = vadd.f32 %v1049, %v1210
    %v1212 = vpop.f32.mrb[0].mxu0
    %1213 = vmatprep.mubr.f32.mxu0 0.0
    %v1214 = vand.u32 %v127, 4294901760
    %1215 = vmatmul.mubr.f32.gmra.mrb[0].mxu0 %v1214
    %v1216 = vpop.f32.mrb[0].mxu0
    %v1217 = vadd.f32 %v1055, %v1216
    %v1218 = vpop.f32.mrb[0].mxu0
    %1219 = vdwg.mxu0
    %v1220 = vmax.f32 %v1127, 1e-08
    %v1221 = vmax.f32 %v1133, 1e-08
    %v1222 = vmax.f32 %v1139, 1e-08
    %v1223 = vmax.f32 %v1145, 1e-08
    %v1224 = vmax.f32 %v1151, 1e-08
    %v1225 = vmax.f32 %v1157, 1e-08
    %v1226 = vmax.f32 %v1163, 1e-08
    %v1227 = vmax.f32 %v1169, 1e-08
    %v1228 = vmax.f32 %v1175, 1e-08
    %v1229 = vmax.f32 %v1181, 1e-08
    %v1230 = vmax.f32 %v1187, 1e-08
    %v1231 = vmax.f32 %v1193, 1e-08
    %v1232 = vmax.f32 %v1199, 1e-08
    %v1233 = vmax.f32 %v1205, 1e-08
    %v1234 = vmax.f32 %v1211, 1e-08
    %v1235 = vmax.f32 %v1217, 1e-08
    %v1236 = vrsqrt.pop %v1220
    %v1237 = vmul.f32 %v1220, %v1236
    %vm1238 = vcmp.eq.f32.partialorder %v1220, inf
    %v1239 = vsel %vm1238, %v1220, %v1237
    %vm1240 = vcmp.eq.f32.partialorder %v1220, 0.0
    %v1241 = vand.u32 %v1220, 2147483648
    %v1242 = vsel %vm1240, %v1241, %v1239
    %v1243 = vrsqrt.pop %v1221
    %v1244 = vmul.f32 %v1221, %v1243
    %vm1245 = vcmp.eq.f32.partialorder %v1221, inf
    %v1246 = vsel %vm1245, %v1221, %v1244
    %vm1247 = vcmp.eq.f32.partialorder %v1221, 0.0
    %v1248 = vand.u32 %v1221, 2147483648
    %v1249 = vsel %vm1247, %v1248, %v1246
    %v1250 = vrsqrt.pop %v1222
    %v1251 = vmul.f32 %v1222, %v1250
    %vm1252 = vcmp.eq.f32.partialorder %v1222, inf
    %v1253 = vsel %vm1252, %v1222, %v1251
    %vm1254 = vcmp.eq.f32.partialorder %v1222, 0.0
    %v1255 = vand.u32 %v1222, 2147483648
    %v1256 = vsel %vm1254, %v1255, %v1253
    %v1257 = vrsqrt.pop %v1223
    %v1258 = vmul.f32 %v1223, %v1257
    %vm1259 = vcmp.eq.f32.partialorder %v1223, inf
    %v1260 = vsel %vm1259, %v1223, %v1258
    %vm1261 = vcmp.eq.f32.partialorder %v1223, 0.0
    %v1262 = vand.u32 %v1223, 2147483648
    %v1263 = vsel %vm1261, %v1262, %v1260
    %v1264 = vrsqrt.pop %v1224
    %v1265 = vmul.f32 %v1224, %v1264
    %vm1266 = vcmp.eq.f32.partialorder %v1224, inf
    %v1267 = vsel %vm1266, %v1224, %v1265
    %vm1268 = vcmp.eq.f32.partialorder %v1224, 0.0
    %v1269 = vand.u32 %v1224, 2147483648
    %v1270 = vsel %vm1268, %v1269, %v1267
    %v1271 = vrsqrt.pop %v1225
    %v1272 = vmul.f32 %v1225, %v1271
    %vm1273 = vcmp.eq.f32.partialorder %v1225, inf
    %v1274 = vsel %vm1273, %v1225, %v1272
    %vm1275 = vcmp.eq.f32.partialorder %v1225, 0.0
    %v1276 = vand.u32 %v1225, 2147483648
    %v1277 = vsel %vm1275, %v1276, %v1274
    %v1278 = vrsqrt.pop %v1226
    %v1279 = vmul.f32 %v1226, %v1278
    %vm1280 = vcmp.eq.f32.partialorder %v1226, inf
    %v1281 = vsel %vm1280, %v1226, %v1279
    %vm1282 = vcmp.eq.f32.partialorder %v1226, 0.0
    %v1283 = vand.u32 %v1226, 2147483648
    %v1284 = vsel %vm1282, %v1283, %v1281
    %v1285 = vrsqrt.pop %v1227
    %v1286 = vmul.f32 %v1227, %v1285
    %vm1287 = vcmp.eq.f32.partialorder %v1227, inf
    %v1288 = vsel %vm1287, %v1227, %v1286
    %vm1289 = vcmp.eq.f32.partialorder %v1227, 0.0
    %v1290 = vand.u32 %v1227, 2147483648
    %v1291 = vsel %vm1289, %v1290, %v1288
    %v1292 = vrsqrt.pop %v1228
    %v1293 = vmul.f32 %v1228, %v1292
    %vm1294 = vcmp.eq.f32.partialorder %v1228, inf
    %v1295 = vsel %vm1294, %v1228, %v1293
    %vm1296 = vcmp.eq.f32.partialorder %v1228, 0.0
    %v1297 = vand.u32 %v1228, 2147483648
    %v1298 = vsel %vm1296, %v1297, %v1295
    %v1299 = vrsqrt.pop %v1229
    %v1300 = vmul.f32 %v1229, %v1299
    %vm1301 = vcmp.eq.f32.partialorder %v1229, inf
    %v1302 = vsel %vm1301, %v1229, %v1300
    %vm1303 = vcmp.eq.f32.partialorder %v1229, 0.0
    %v1304 = vand.u32 %v1229, 2147483648
    %v1305 = vsel %vm1303, %v1304, %v1302
    %v1306 = vrsqrt.pop %v1230
    %v1307 = vmul.f32 %v1230, %v1306
    %vm1308 = vcmp.eq.f32.partialorder %v1230, inf
    %v1309 = vsel %vm1308, %v1230, %v1307
    %vm1310 = vcmp.eq.f32.partialorder %v1230, 0.0
    %v1311 = vand.u32 %v1230, 2147483648
    %v1312 = vsel %vm1310, %v1311, %v1309
    %v1313 = vrsqrt.pop %v1231
    %v1314 = vmul.f32 %v1231, %v1313
    %vm1315 = vcmp.eq.f32.partialorder %v1231, inf
    %v1316 = vsel %vm1315, %v1231, %v1314
    %vm1317 = vcmp.eq.f32.partialorder %v1231, 0.0
    %v1318 = vand.u32 %v1231, 2147483648
    %v1319 = vsel %vm1317, %v1318, %v1316
    %v1320 = vrsqrt.pop %v1232
    %v1321 = vmul.f32 %v1232, %v1320
    %vm1322 = vcmp.eq.f32.partialorder %v1232, inf
    %v1323 = vsel %vm1322, %v1232, %v1321
    %vm1324 = vcmp.eq.f32.partialorder %v1232, 0.0
    %v1325 = vand.u32 %v1232, 2147483648
    %v1326 = vsel %vm1324, %v1325, %v1323
    %v1327 = vrsqrt.pop %v1233
    %v1328 = vmul.f32 %v1233, %v1327
    %vm1329 = vcmp.eq.f32.partialorder %v1233, inf
    %v1330 = vsel %vm1329, %v1233, %v1328
    %vm1331 = vcmp.eq.f32.partialorder %v1233, 0.0
    %v1332 = vand.u32 %v1233, 2147483648
    %v1333 = vsel %vm1331, %v1332, %v1330
    %v1334 = vrsqrt.pop %v1234
    %v1335 = vmul.f32 %v1234, %v1334
    %vm1336 = vcmp.eq.f32.partialorder %v1234, inf
    %v1337 = vsel %vm1336, %v1234, %v1335
    %vm1338 = vcmp.eq.f32.partialorder %v1234, 0.0
    %v1339 = vand.u32 %v1234, 2147483648
    %v1340 = vsel %vm1338, %v1339, %v1337
    %v1341 = vrsqrt.pop %v1235
    %v1342 = vmul.f32 %v1235, %v1341
    %vm1343 = vcmp.eq.f32.partialorder %v1235, inf
    %v1344 = vsel %vm1343, %v1235, %v1342
    %vm1345 = vcmp.eq.f32.partialorder %v1235, 0.0
    %v1346 = vand.u32 %v1235, 2147483648
    %v1347 = vsel %vm1345, %v1346, %v1344
    %v1348 = vsub.f32 10.0, %v1242
    %v1349 = vsub.f32 10.0, %v1249
    %v1350 = vsub.f32 10.0, %v1256
    %v1351 = vsub.f32 10.0, %v1263
    %v1352 = vsub.f32 10.0, %v1270
    %v1353 = vsub.f32 10.0, %v1277
    %v1354 = vsub.f32 10.0, %v1284
    %v1355 = vsub.f32 10.0, %v1291
    %v1356 = vsub.f32 10.0, %v1298
    %v1357 = vsub.f32 10.0, %v1305
    %v1358 = vsub.f32 10.0, %v1312
    %v1359 = vsub.f32 10.0, %v1319
    %v1360 = vsub.f32 10.0, %v1326
    %v1361 = vsub.f32 10.0, %v1333
    %v1362 = vsub.f32 10.0, %v1340
    %v1363 = vsub.f32 10.0, %v1347
    %v1364 = vmax.f32 %v1348, 0.0
    %v1365 = vmax.f32 %v1349, 0.0
    %v1366 = vmax.f32 %v1350, 0.0
    %v1367 = vmax.f32 %v1351, 0.0
    %v1368 = vmax.f32 %v1352, 0.0
    %v1369 = vmax.f32 %v1353, 0.0
    %v1370 = vmax.f32 %v1354, 0.0
    %v1371 = vmax.f32 %v1355, 0.0
    %v1372 = vmax.f32 %v1356, 0.0
    %v1373 = vmax.f32 %v1357, 0.0
    %v1374 = vmax.f32 %v1358, 0.0
    %v1375 = vmax.f32 %v1359, 0.0
    %v1376 = vmax.f32 %v1360, 0.0
    %v1377 = vmax.f32 %v1361, 0.0
    %v1378 = vmax.f32 %v1362, 0.0
    %v1379 = vmax.f32 %v1363, 0.0
    %v1380 = vcvt.f32.s32.to.zero.pseudo %v63
    %v1381 = vcvt.f32.s32.to.zero.pseudo %v64
    %v1382 = vcvt.f32.s32.to.zero.pseudo %v65
    %v1383 = vcvt.f32.s32.to.zero.pseudo %v66
    %v1384 = vcvt.f32.s32.to.zero.pseudo %v67
    %v1385 = vcvt.f32.s32.to.zero.pseudo %v68
    %v1386 = vcvt.f32.s32.to.zero.pseudo %v69
    %v1387 = vcvt.f32.s32.to.zero.pseudo %v70
    %v1388 = vcvt.f32.s32.to.zero.pseudo %v71
    %v1389 = vcvt.f32.s32.to.zero.pseudo %v72
    %v1390 = vcvt.f32.s32.to.zero.pseudo %v73
    %v1391 = vcvt.f32.s32.to.zero.pseudo %v74
    %v1392 = vcvt.f32.s32.to.zero.pseudo %v75
    %v1393 = vcvt.f32.s32.to.zero.pseudo %v76
    %v1394 = vcvt.f32.s32.to.zero.pseudo %v77
    %v1395 = vcvt.f32.s32.to.zero.pseudo %v78
    %v1396 = vlaneseq
    %v1397 = vand.u32 %v1396, 127
    %1398 = vset.pattern.permute.xlu0 5
    %1399 = vperm.xlu0 %1398, %v1380
    %v1400 = vpop.permute.xlu0 %1399
    %1401 = vset.pattern.permute.xlu0 5
    %1402 = vperm.xlu0 %1401, %v1381
    %v1403 = vpop.permute.xlu0 %1402
    %1404 = vset.pattern.permute.xlu0 5
    %1405 = vperm.xlu0 %1404, %v1382
    %v1406 = vpop.permute.xlu0 %1405
    %1407 = vset.pattern.permute.xlu0 5
    %1408 = vperm.xlu0 %1407, %v1383
    %v1409 = vpop.permute.xlu0 %1408
    %1410 = vset.pattern.permute.xlu0 5
    %1411 = vperm.xlu0 %1410, %v1384
    %v1412 = vpop.permute.xlu0 %1411
    %1413 = vset.pattern.permute.xlu0 5
    %1414 = vperm.xlu0 %1413, %v1385
    %v1415 = vpop.permute.xlu0 %1414
    %1416 = vset.pattern.permute.xlu0 5
    %1417 = vperm.xlu0 %1416, %v1386
    %v1418 = vpop.permute.xlu0 %1417
    %1419 = vset.pattern.permute.xlu0 5
    %1420 = vperm.xlu0 %1419, %v1387
    %v1421 = vpop.permute.xlu0 %1420
    %1422 = vset.pattern.permute.xlu0 5
    %1423 = vperm.xlu0 %1422, %v1388
    %v1424 = vpop.permute.xlu0 %1423
    %1425 = vset.pattern.permute.xlu0 5
    %1426 = vperm.xlu0 %1425, %v1389
    %v1427 = vpop.permute.xlu0 %1426
    %1428 = vset.pattern.permute.xlu0 5
    %1429 = vperm.xlu0 %1428, %v1390
    %v1430 = vpop.permute.xlu0 %1429
    %1431 = vset.pattern.permute.xlu0 5
    %1432 = vperm.xlu0 %1431, %v1391
    %v1433 = vpop.permute.xlu0 %1432
    %1434 = vset.pattern.permute.xlu0 5
    %1435 = vperm.xlu0 %1434, %v1392
    %v1436 = vpop.permute.xlu0 %1435
    %1437 = vset.pattern.permute.xlu0 5
    %1438 = vperm.xlu0 %1437, %v1393
    %v1439 = vpop.permute.xlu0 %1438
    %1440 = vset.pattern.permute.xlu0 5
    %1441 = vperm.xlu0 %1440, %v1394
    %v1442 = vpop.permute.xlu0 %1441
    %1443 = vset.pattern.permute.xlu0 5
    %1444 = vperm.xlu0 %1443, %v1395
    %v1445 = vpop.permute.xlu0 %1444
    %vm1446 = vcmp.eq.s32.totalorder %v1400, %v1397
    %vm1447 = vcmp.eq.s32.totalorder %v1403, %v1397
    %vm1448 = vcmp.eq.s32.totalorder %v1406, %v1397
    %vm1449 = vcmp.eq.s32.totalorder %v1409, %v1397
    %vm1450 = vcmp.eq.s32.totalorder %v1412, %v1397
    %vm1451 = vcmp.eq.s32.totalorder %v1415, %v1397
    %vm1452 = vcmp.eq.s32.totalorder %v1418, %v1397
    %vm1453 = vcmp.eq.s32.totalorder %v1421, %v1397
    %vm1454 = vcmp.eq.s32.totalorder %v1424, %v1397
    %vm1455 = vcmp.eq.s32.totalorder %v1427, %v1397
    %vm1456 = vcmp.eq.s32.totalorder %v1430, %v1397
    %vm1457 = vcmp.eq.s32.totalorder %v1433, %v1397
    %vm1458 = vcmp.eq.s32.totalorder %v1436, %v1397
    %vm1459 = vcmp.eq.s32.totalorder %v1439, %v1397
    %vm1460 = vcmp.eq.s32.totalorder %v1442, %v1397
    %vm1461 = vcmp.eq.s32.totalorder %v1445, %v1397
    %v1462 = vsel %vm1446, %v1220, 0.0
    %v1463 = vsel %vm1447, %v1221, 0.0
    %v1464 = vsel %vm1448, %v1222, 0.0
    %v1465 = vsel %vm1449, %v1223, 0.0
    %v1466 = vsel %vm1450, %v1224, 0.0
    %v1467 = vsel %vm1451, %v1225, 0.0
    %v1468 = vsel %vm1452, %v1226, 0.0
    %v1469 = vsel %vm1453, %v1227, 0.0
    %v1470 = vsel %vm1454, %v1228, 0.0
    %v1471 = vsel %vm1455, %v1229, 0.0
    %v1472 = vsel %vm1456, %v1230, 0.0
    %v1473 = vsel %vm1457, %v1231, 0.0
    %v1474 = vsel %vm1458, %v1232, 0.0
    %v1475 = vsel %vm1459, %v1233, 0.0
    %v1476 = vsel %vm1460, %v1234, 0.0
    %v1477 = vsel %vm1461, %v1235, 0.0
    %v1478 = vsel %vm1446, 0.0, %v1364
    %v1479 = vsel %vm1447, 0.0, %v1365
    %v1480 = vsel %vm1448, 0.0, %v1366
    %v1481 = vsel %vm1449, 0.0, %v1367
    %v1482 = vsel %vm1450, 0.0, %v1368
    %v1483 = vsel %vm1451, 0.0, %v1369
    %v1484 = vsel %vm1452, 0.0, %v1370
    %v1485 = vsel %vm1453, 0.0, %v1371
    %v1486 = vsel %vm1454, 0.0, %v1372
    %v1487 = vsel %vm1455, 0.0, %v1373
    %v1488 = vsel %vm1456, 0.0, %v1374
    %v1489 = vsel %vm1457, 0.0, %v1375
    %v1490 = vsel %vm1458, 0.0, %v1376
    %v1491 = vsel %vm1459, 0.0, %v1377
    %v1492 = vsel %vm1460, 0.0, %v1378
    %v1493 = vsel %vm1461, 0.0, %v1379
    %v1494 = vld [vmem:[%s55] sm:$0xff]
    %v1495 = vld [vmem:[%s55 + $0x8] sm:$0xff]
    %v1496 = vld [vmem:[#allocation2] sm:$0xff]
    %1497 = vmatprep.subr.mxu0 0.0
    %v1498 = vand.u32 %v1462, 4294901760
    %1499 = vmatpush1.msra.mxu0 %v1498
    %1500 = vmatprep.subr.mxu0 0.0
    %v1501 = vand.u32 %v1463, 4294901760
    %1502 = vmatpush1.msra.mxu0 %v1501
    %1503 = vmatprep.subr.mxu0 0.0
    %v1504 = vand.u32 %v1464, 4294901760
    %1505 = vmatpush1.msra.mxu0 %v1504
    %1506 = vmatprep.subr.mxu0 0.0
    %v1507 = vand.u32 %v1465, 4294901760
    %1508 = vmatpush1.msra.mxu0 %v1507
    %1509 = vmatprep.subr.mxu0 0.0
    %v1510 = vand.u32 %v1466, 4294901760
    %1511 = vmatpush1.msra.mxu0 %v1510
    %1512 = vmatprep.subr.mxu0 0.0
    %v1513 = vand.u32 %v1467, 4294901760
    %1514 = vmatpush1.msra.mxu0 %v1513
    %1515 = vmatprep.subr.mxu0 0.0
    %v1516 = vand.u32 %v1468, 4294901760
    %1517 = vmatpush1.msra.mxu0 %v1516
    %1518 = vmatprep.subr.mxu0 0.0
    %v1519 = vand.u32 %v1469, 4294901760
    %1520 = vmatpush1.msra.mxu0 %v1519
    %1521 = vmatprep.subr.mxu0 0.0
    %v1522 = vand.u32 %v1470, 4294901760
    %1523 = vmatpush1.msra.mxu0 %v1522
    %1524 = vmatprep.subr.mxu0 0.0
    %v1525 = vand.u32 %v1471, 4294901760
    %1526 = vmatpush1.msra.mxu0 %v1525
    %1527 = vmatprep.subr.mxu0 0.0
    %v1528 = vand.u32 %v1472, 4294901760
    %1529 = vmatpush1.msra.mxu0 %v1528
    %1530 = vmatprep.subr.mxu0 0.0
    %v1531 = vand.u32 %v1473, 4294901760
    %1532 = vmatpush1.msra.mxu0 %v1531
    %1533 = vmatprep.subr.mxu0 0.0
    %v1534 = vand.u32 %v1474, 4294901760
    %1535 = vmatpush1.msra.mxu0 %v1534
    %1536 = vmatprep.subr.mxu0 0.0
    %v1537 = vand.u32 %v1475, 4294901760
    %1538 = vmatpush1.msra.mxu0 %v1537
    %1539 = vmatprep.subr.mxu0 0.0
    %v1540 = vand.u32 %v1476, 4294901760
    %1541 = vmatpush1.msra.mxu0 %v1540
    %1542 = vmatprep.subr.mxu0 0.0
    %v1543 = vand.u32 %v1477, 4294901760
    %1544 = vmatpush1.msra.mxu0 %v1543
    %1545 = vmatprep.subr.mxu0 0.0
    %1546 = vmatpush1.msra.mxu0 0.0
    %1547 = vmatprep.subr.mxu0 0.0
    %1548 = vmatpush1.msra.mxu0 0.0
    %1549 = vmatprep.subr.mxu0 0.0
    %1550 = vmatpush1.msra.mxu0 0.0
    %1551 = vmatprep.subr.mxu0 0.0
    %1552 = vmatpush1.msra.mxu0 0.0
    %1553 = vmatprep.subr.mxu0 0.0
    %1554 = vmatpush1.msra.mxu0 0.0
    %1555 = vmatprep.subr.mxu0 0.0
    %1556 = vmatpush1.msra.mxu0 0.0
    %1557 = vmatprep.subr.mxu0 0.0
    %1558 = vmatpush1.msra.mxu0 0.0
    %1559 = vmatprep.subr.mxu0 0.0
    %1560 = vmatpush1.msra.mxu0 0.0
    %1561 = vmatprep.subr.mxu0 0.0
    %1562 = vmatpush1.msra.mxu0 0.0
    %1563 = vmatprep.subr.mxu0 0.0
    %1564 = vmatpush1.msra.mxu0 0.0
    %1565 = vmatprep.subr.mxu0 0.0
    %1566 = vmatpush1.msra.mxu0 0.0
    %1567 = vmatprep.subr.mxu0 0.0
    %1568 = vmatpush1.msra.mxu0 0.0
    %1569 = vmatprep.subr.mxu0 0.0
    %1570 = vmatpush1.msra.mxu0 0.0
    %1571 = vmatprep.subr.mxu0 0.0
    %1572 = vmatpush1.msra.mxu0 0.0
    %1573 = vmatprep.subr.mxu0 0.0
    %1574 = vmatpush1.msra.mxu0 0.0
    %1575 = vmatprep.subr.mxu0 0.0
    %1576 = vmatpush1.msra.mxu0 0.0
    %1577 = vmatprep.mubr.f32.mxu0 0.0
    %v1578 = vand.u32 %v1494, 4294901760
    %v1579 = vsub.f32 %v1494, %v1578
    %v1580 = vand.u32 %v1579, 4294901760
    %v1581 = vsub.f32 %v1579, %v1580
    %v1582 = vand.u32 %v1581, 4294901760
    %1583 = vmatmul.mubr.f32.gmra.mrb[0].mxu0 %v1582
    %v1584 = vpop.f32.mrb[0].mxu0
    %v1585 = vadd.f32 0.0, %v1584
    %v1586 = vpop.f32.mrb[0].mxu0
    %1587 = vdwg.mxu0
    %1588 = vmatprep.subr.mxu0 0.0
    %v1589 = vand.u32 %v1462, 4294901760
    %v1590 = vsub.f32 %v1462, %v1589
    %v1591 = vand.u32 %v1590, 4294901760
    %v1592 = vsub.f32 %v1590, %v1591
    %v1593 = vand.u32 %v1592, 4294901760
    %1594 = vmatpush1.msra.mxu0 %v1593
    %1595 = vmatprep.subr.mxu0 0.0
    %v1596 = vand.u32 %v1463, 4294901760
    %v1597 = vsub.f32 %v1463, %v1596
    %v1598 = vand.u32 %v1597, 4294901760
    %v1599 = vsub.f32 %v1597, %v1598
    %v1600 = vand.u32 %v1599, 4294901760
    %1601 = vmatpush1.msra.mxu0 %v1600
    %1602 = vmatprep.subr.mxu0 0.0
    %v1603 = vand.u32 %v1464, 4294901760
    %v1604 = vsub.f32 %v1464, %v1603
    %v1605 = vand.u32 %v1604, 4294901760
    %v1606 = vsub.f32 %v1604, %v1605
    %v1607 = vand.u32 %v1606, 4294901760
    %1608 = vmatpush1.msra.mxu0 %v1607
    %1609 = vmatprep.subr.mxu0 0.0
    %v1610 = vand.u32 %v1465, 4294901760
    %v1611 = vsub.f32 %v1465, %v1610
    %v1612 = vand.u32 %v1611, 4294901760
    %v1613 = vsub.f32 %v1611, %v1612
    %v1614 = vand.u32 %v1613, 4294901760
    %1615 = vmatpush1.msra.mxu0 %v1614
    %1616 = vmatprep.subr.mxu0 0.0
    %v1617 = vand.u32 %v1466, 4294901760
    %v1618 = vsub.f32 %v1466, %v1617
    %v1619 = vand.u32 %v1618, 4294901760
    %v1620 = vsub.f32 %v1618, %v1619
    %v1621 = vand.u32 %v1620, 4294901760
    %1622 = vmatpush1.msra.mxu0 %v1621
    %1623 = vmatprep.subr.mxu0 0.0
    %v1624 = vand.u32 %v1467, 4294901760
    %v1625 = vsub.f32 %v1467, %v1624
    %v1626 = vand.u32 %v1625, 4294901760
    %v1627 = vsub.f32 %v1625, %v1626
    %v1628 = vand.u32 %v1627, 4294901760
    %1629 = vmatpush1.msra.mxu0 %v1628
    %1630 = vmatprep.subr.mxu0 0.0
    %v1631 = vand.u32 %v1468, 4294901760
    %v1632 = vsub.f32 %v1468, %v1631
    %v1633 = vand.u32 %v1632, 4294901760
    %v1634 = vsub.f32 %v1632, %v1633
    %v1635 = vand.u32 %v1634, 4294901760
    %1636 = vmatpush1.msra.mxu0 %v1635
    %1637 = vmatprep.subr.mxu0 0.0
    %v1638 = vand.u32 %v1469, 4294901760
    %v1639 = vsub.f32 %v1469, %v1638
    %v1640 = vand.u32 %v1639, 4294901760
    %v1641 = vsub.f32 %v1639, %v1640
    %v1642 = vand.u32 %v1641, 4294901760
    %1643 = vmatpush1.msra.mxu0 %v1642
    %1644 = vmatprep.subr.mxu0 0.0
    %v1645 = vand.u32 %v1470, 4294901760
    %v1646 = vsub.f32 %v1470, %v1645
    %v1647 = vand.u32 %v1646, 4294901760
    %v1648 = vsub.f32 %v1646, %v1647
    %v1649 = vand.u32 %v1648, 4294901760
    %1650 = vmatpush1.msra.mxu0 %v1649
    %1651 = vmatprep.subr.mxu0 0.0
    %v1652 = vand.u32 %v1471, 4294901760
    %v1653 = vsub.f32 %v1471, %v1652
    %v1654 = vand.u32 %v1653, 4294901760
    %v1655 = vsub.f32 %v1653, %v1654
    %v1656 = vand.u32 %v1655, 4294901760
    %1657 = vmatpush1.msra.mxu0 %v1656
    %1658 = vmatprep.subr.mxu0 0.0
    %v1659 = vand.u32 %v1472, 4294901760
    %v1660 = vsub.f32 %v1472, %v1659
    %v1661 = vand.u32 %v1660, 4294901760
    %v1662 = vsub.f32 %v1660, %v1661
    %v1663 = vand.u32 %v1662, 4294901760
    %1664 = vmatpush1.msra.mxu0 %v1663
    %1665 = vmatprep.subr.mxu0 0.0
    %v1666 = vand.u32 %v1473, 4294901760
    %v1667 = vsub.f32 %v1473, %v1666
    %v1668 = vand.u32 %v1667, 4294901760
    %v1669 = vsub.f32 %v1667, %v1668
    %v1670 = vand.u32 %v1669, 4294901760
    %1671 = vmatpush1.msra.mxu0 %v1670
    %1672 = vmatprep.subr.mxu0 0.0
    %v1673 = vand.u32 %v1474, 4294901760
    %v1674 = vsub.f32 %v1474, %v1673
    %v1675 = vand.u32 %v1674, 4294901760
    %v1676 = vsub.f32 %v1674, %v1675
    %v1677 = vand.u32 %v1676, 4294901760
    %1678 = vmatpush1.msra.mxu0 %v1677
    %1679 = vmatprep.subr.mxu0 0.0
    %v1680 = vand.u32 %v1475, 4294901760
    %v1681 = vsub.f32 %v1475, %v1680
    %v1682 = vand.u32 %v1681, 4294901760
    %v1683 = vsub.f32 %v1681, %v1682
    %v1684 = vand.u32 %v1683, 4294901760
    %1685 = vmatpush1.msra.mxu0 %v1684
    %1686 = vmatprep.subr.mxu0 0.0
    %v1687 = vand.u32 %v1476, 4294901760
    %v1688 = vsub.f32 %v1476, %v1687
    %v1689 = vand.u32 %v1688, 4294901760
    %v1690 = vsub.f32 %v1688, %v1689
    %v1691 = vand.u32 %v1690, 4294901760
    %1692 = vmatpush1.msra.mxu0 %v1691
    %1693 = vmatprep.subr.mxu0 0.0
    %v1694 = vand.u32 %v1477, 4294901760
    %v1695 = vsub.f32 %v1477, %v1694
    %v1696 = vand.u32 %v1695, 4294901760
    %v1697 = vsub.f32 %v1695, %v1696
    %v1698 = vand.u32 %v1697, 4294901760
    %1699 = vmatpush1.msra.mxu0 %v1698
    %1700 = vmatprep.subr.mxu0 0.0
    %1701 = vmatpush1.msra.mxu0 0.0
    %1702 = vmatprep.subr.mxu0 0.0
    %1703 = vmatpush1.msra.mxu0 0.0
    %1704 = vmatprep.subr.mxu0 0.0
    %1705 = vmatpush1.msra.mxu0 0.0
    %1706 = vmatprep.subr.mxu0 0.0
    %1707 = vmatpush1.msra.mxu0 0.0
    %1708 = vmatprep.subr.mxu0 0.0
    %1709 = vmatpush1.msra.mxu0 0.0
    %1710 = vmatprep.subr.mxu0 0.0
    %1711 = vmatpush1.msra.mxu0 0.0
    %1712 = vmatprep.subr.mxu0 0.0
    %1713 = vmatpush1.msra.mxu0 0.0
    %1714 = vmatprep.subr.mxu0 0.0
    %1715 = vmatpush1.msra.mxu0 0.0
    %1716 = vmatprep.subr.mxu0 0.0
    %1717 = vmatpush1.msra.mxu0 0.0
    %1718 = vmatprep.subr.mxu0 0.0
    %1719 = vmatpush1.msra.mxu0 0.0
    %1720 = vmatprep.subr.mxu0 0.0
    %1721 = vmatpush1.msra.mxu0 0.0
    %1722 = vmatprep.subr.mxu0 0.0
    %1723 = vmatpush1.msra.mxu0 0.0
    %1724 = vmatprep.subr.mxu0 0.0
    %1725 = vmatpush1.msra.mxu0 0.0
    %1726 = vmatprep.subr.mxu0 0.0
    %1727 = vmatpush1.msra.mxu0 0.0
    %1728 = vmatprep.subr.mxu0 0.0
    %1729 = vmatpush1.msra.mxu0 0.0
    %1730 = vmatprep.subr.mxu0 0.0
    %1731 = vmatpush1.msra.mxu0 0.0
    %1732 = vmatprep.mubr.f32.mxu0 0.0
    %v1733 = vand.u32 %v1494, 4294901760
    %1734 = vmatmul.mubr.f32.gmra.mrb[0].mxu0 %v1733
    %v1735 = vpop.f32.mrb[0].mxu0
    %v1736 = vadd.f32 %v1585, %v1735
    %v1737 = vpop.f32.mrb[0].mxu0
    %1738 = vdwg.mxu0
    %1739 = vmatprep.subr.mxu0 0.0
    %v1740 = vand.u32 %v1462, 4294901760
    %v1741 = vsub.f32 %v1462, %v1740
    %1742 = vmatpush1.msra.mxu0 %v1741
    %1743 = vmatprep.subr.mxu0 0.0
    %v1744 = vand.u32 %v1463, 4294901760
    %v1745 = vsub.f32 %v1463, %v1744
    %1746 = vmatpush1.msra.mxu0 %v1745
    %1747 = vmatprep.subr.mxu0 0.0
    %v1748 = vand.u32 %v1464, 4294901760
    %v1749 = vsub.f32 %v1464, %v1748
    %1750 = vmatpush1.msra.mxu0 %v1749
    %1751 = vmatprep.subr.mxu0 0.0
    %v1752 = vand.u32 %v1465, 4294901760
    %v1753 = vsub.f32 %v1465, %v1752
    %1754 = vmatpush1.msra.mxu0 %v1753
    %1755 = vmatprep.subr.mxu0 0.0
    %v1756 = vand.u32 %v1466, 4294901760
    %v1757 = vsub.f32 %v1466, %v1756
    %1758 = vmatpush1.msra.mxu0 %v1757
    %1759 = vmatprep.subr.mxu0 0.0
    %v1760 = vand.u32 %v1467, 4294901760
    %v1761 = vsub.f32 %v1467, %v1760
    %1762 = vmatpush1.msra.mxu0 %v1761
    %1763 = vmatprep.subr.mxu0 0.0
    %v1764 = vand.u32 %v1468, 4294901760
    %v1765 = vsub.f32 %v1468, %v1764
    %1766 = vmatpush1.msra.mxu0 %v1765
    %1767 = vmatprep.subr.mxu0 0.0
    %v1768 = vand.u32 %v1469, 4294901760
    %v1769 = vsub.f32 %v1469, %v1768
    %1770 = vmatpush1.msra.mxu0 %v1769
    %1771 = vmatprep.subr.mxu0 0.0
    %v1772 = vand.u32 %v1470, 4294901760
    %v1773 = vsub.f32 %v1470, %v1772
    %1774 = vmatpush1.msra.mxu0 %v1773
    %1775 = vmatprep.subr.mxu0 0.0
    %v1776 = vand.u32 %v1471, 4294901760
    %v1777 = vsub.f32 %v1471, %v1776
    %1778 = vmatpush1.msra.mxu0 %v1777
    %1779 = vmatprep.subr.mxu0 0.0
    %v1780 = vand.u32 %v1472, 4294901760
    %v1781 = vsub.f32 %v1472, %v1780
    %1782 = vmatpush1.msra.mxu0 %v1781
    %1783 = vmatprep.subr.mxu0 0.0
    %v1784 = vand.u32 %v1473, 4294901760
    %v1785 = vsub.f32 %v1473, %v1784
    %1786 = vmatpush1.msra.mxu0 %v1785
    %1787 = vmatprep.subr.mxu0 0.0
    %v1788 = vand.u32 %v1474, 4294901760
    %v1789 = vsub.f32 %v1474, %v1788
    %1790 = vmatpush1.msra.mxu0 %v1789
    %1791 = vmatprep.subr.mxu0 0.0
    %v1792 = vand.u32 %v1475, 4294901760
    %v1793 = vsub.f32 %v1475, %v1792
    %1794 = vmatpush1.msra.mxu0 %v1793
    %1795 = vmatprep.subr.mxu0 0.0
    %v1796 = vand.u32 %v1476, 4294901760
    %v1797 = vsub.f32 %v1476, %v1796
    %1798 = vmatpush1.msra.mxu0 %v1797
    %1799 = vmatprep.subr.mxu0 0.0
    %v1800 = vand.u32 %v1477, 4294901760
    %v1801 = vsub.f32 %v1477, %v1800
    %1802 = vmatpush1.msra.mxu0 %v1801
    %1803 = vmatprep.subr.mxu0 0.0
    %1804 = vmatpush1.msra.mxu0 0.0
    %1805 = vmatprep.subr.mxu0 0.0
    %1806 = vmatpush1.msra.mxu0 0.0
    %1807 = vmatprep.subr.mxu0 0.0
    %1808 = vmatpush1.msra.mxu0 0.0
    %1809 = vmatprep.subr.mxu0 0.0
    %1810 = vmatpush1.msra.mxu0 0.0
    %1811 = vmatprep.subr.mxu0 0.0
    %1812 = vmatpush1.msra.mxu0 0.0
    %1813 = vmatprep.subr.mxu0 0.0
    %1814 = vmatpush1.msra.mxu0 0.0
    %1815 = vmatprep.subr.mxu0 0.0
    %1816 = vmatpush1.msra.mxu0 0.0
    %1817 = vmatprep.subr.mxu0 0.0
    %1818 = vmatpush1.msra.mxu0 0.0
    %1819 = vmatprep.subr.mxu0 0.0
    %1820 = vmatpush1.msra.mxu0 0.0
    %1821 = vmatprep.subr.mxu0 0.0
    %1822 = vmatpush1.msra.mxu0 0.0
    %1823 = vmatprep.subr.mxu0 0.0
    %1824 = vmatpush1.msra.mxu0 0.0
    %1825 = vmatprep.subr.mxu0 0.0
    %1826 = vmatpush1.msra.mxu0 0.0
    %1827 = vmatprep.subr.mxu0 0.0
    %1828 = vmatpush1.msra.mxu0 0.0
    %1829 = vmatprep.subr.mxu0 0.0
    %1830 = vmatpush1.msra.mxu0 0.0
    %1831 = vmatprep.subr.mxu0 0.0
    %1832 = vmatpush1.msra.mxu0 0.0
    %1833 = vmatprep.subr.mxu0 0.0
    %1834 = vmatpush1.msra.mxu0 0.0
    %1835 = vmatprep.mubr.f32.mxu0 0.0
    %v1836 = vand.u32 %v1494, 4294901760
    %v1837 = vsub.f32 %v1494, %v1836
    %1838 = vmatmul.mubr.f32.gmra.mrb[0].mxu0 %v1837
    %v1839 = vpop.f32.mrb[0].mxu0
    %v1840 = vadd.f32 %v1736, %v1839
    %v1841 = vpop.f32.mrb[0].mxu0
    %1842 = vdwg.mxu0
    %1843 = vmatprep.subr.mxu0 0.0
    %v1844 = vand.u32 %v1462, 4294901760
    %1845 = vmatpush1.msra.mxu0 %v1844
    %1846 = vmatprep.subr.mxu0 0.0
    %v1847 = vand.u32 %v1463, 4294901760
    %1848 = vmatpush1.msra.mxu0 %v1847
    %1849 = vmatprep.subr.mxu0 0.0
    %v1850 = vand.u32 %v1464, 4294901760
    %1851 = vmatpush1.msra.mxu0 %v1850
    %1852 = vmatprep.subr.mxu0 0.0
    %v1853 = vand.u32 %v1465, 4294901760
    %1854 = vmatpush1.msra.mxu0 %v1853
    %1855 = vmatprep.subr.mxu0 0.0
    %v1856 = vand.u32 %v1466, 4294901760
    %1857 = vmatpush1.msra.mxu0 %v1856
    %1858 = vmatprep.subr.mxu0 0.0
    %v1859 = vand.u32 %v1467, 4294901760
    %1860 = vmatpush1.msra.mxu0 %v1859
    %1861 = vmatprep.subr.mxu0 0.0
    %v1862 = vand.u32 %v1468, 4294901760
    %1863 = vmatpush1.msra.mxu0 %v1862
    %1864 = vmatprep.subr.mxu0 0.0
    %v1865 = vand.u32 %v1469, 4294901760
    %1866 = vmatpush1.msra.mxu0 %v1865
    %1867 = vmatprep.subr.mxu0 0.0
    %v1868 = vand.u32 %v1470, 4294901760
    %1869 = vmatpush1.msra.mxu0 %v1868
    %1870 = vmatprep.subr.mxu0 0.0
    %v1871 = vand.u32 %v1471, 4294901760
    %1872 = vmatpush1.msra.mxu0 %v1871
    %1873 = vmatprep.subr.mxu0 0.0
    %v1874 = vand.u32 %v1472, 4294901760
    %1875 = vmatpush1.msra.mxu0 %v1874
    %1876 = vmatprep.subr.mxu0 0.0
    %v1877 = vand.u32 %v1473, 4294901760
    %1878 = vmatpush1.msra.mxu0 %v1877
    %1879 = vmatprep.subr.mxu0 0.0
    %v1880 = vand.u32 %v1474, 4294901760
    %1881 = vmatpush1.msra.mxu0 %v1880
    %1882 = vmatprep.subr.mxu0 0.0
    %v1883 = vand.u32 %v1475, 4294901760
    %1884 = vmatpush1.msra.mxu0 %v1883
    %1885 = vmatprep.subr.mxu0 0.0
    %v1886 = vand.u32 %v1476, 4294901760
    %1887 = vmatpush1.msra.mxu0 %v1886
    %1888 = vmatprep.subr.mxu0 0.0
    %v1889 = vand.u32 %v1477, 4294901760
    %1890 = vmatpush1.msra.mxu0 %v1889
    %1891 = vmatprep.subr.mxu0 0.0
    %1892 = vmatpush1.msra.mxu0 0.0
    %1893 = vmatprep.subr.mxu0 0.0
    %1894 = vmatpush1.msra.mxu0 0.0
    %1895 = vmatprep.subr.mxu0 0.0
    %1896 = vmatpush1.msra.mxu0 0.0
    %1897 = vmatprep.subr.mxu0 0.0
    %1898 = vmatpush1.msra.mxu0 0.0
    %1899 = vmatprep.subr.mxu0 0.0
    %1900 = vmatpush1.msra.mxu0 0.0
    %1901 = vmatprep.subr.mxu0 0.0
    %1902 = vmatpush1.msra.mxu0 0.0
    %1903 = vmatprep.subr.mxu0 0.0
    %1904 = vmatpush1.msra.mxu0 0.0
    %1905 = vmatprep.subr.mxu0 0.0
    %1906 = vmatpush1.msra.mxu0 0.0
    %1907 = vmatprep.subr.mxu0 0.0
    %1908 = vmatpush1.msra.mxu0 0.0
    %1909 = vmatprep.subr.mxu0 0.0
    %1910 = vmatpush1.msra.mxu0 0.0
    %1911 = vmatprep.subr.mxu0 0.0
    %1912 = vmatpush1.msra.mxu0 0.0
    %1913 = vmatprep.subr.mxu0 0.0
    %1914 = vmatpush1.msra.mxu0 0.0
    %1915 = vmatprep.subr.mxu0 0.0
    %1916 = vmatpush1.msra.mxu0 0.0
    %1917 = vmatprep.subr.mxu0 0.0
    %1918 = vmatpush1.msra.mxu0 0.0
    %1919 = vmatprep.subr.mxu0 0.0
    %1920 = vmatpush1.msra.mxu0 0.0
    %1921 = vmatprep.subr.mxu0 0.0
    %1922 = vmatpush1.msra.mxu0 0.0
    %1923 = vmatprep.mubr.f32.mxu0 0.0
    %v1924 = vand.u32 %v1494, 4294901760
    %v1925 = vsub.f32 %v1494, %v1924
    %v1926 = vand.u32 %v1925, 4294901760
    %1927 = vmatmul.mubr.f32.gmra.mrb[0].mxu0 %v1926
    %v1928 = vpop.f32.mrb[0].mxu0
    %v1929 = vadd.f32 %v1840, %v1928
    %v1930 = vpop.f32.mrb[0].mxu0
    %1931 = vdwg.mxu0
    %1932 = vmatprep.subr.mxu0 0.0
    %v1933 = vand.u32 %v1462, 4294901760
    %v1934 = vsub.f32 %v1462, %v1933
    %v1935 = vand.u32 %v1934, 4294901760
    %1936 = vmatpush1.msra.mxu0 %v1935
    %1937 = vmatprep.subr.mxu0 0.0
    %v1938 = vand.u32 %v1463, 4294901760
    %v1939 = vsub.f32 %v1463, %v1938
    %v1940 = vand.u32 %v1939, 4294901760
    %1941 = vmatpush1.msra.mxu0 %v1940
    %1942 = vmatprep.subr.mxu0 0.0
    %v1943 = vand.u32 %v1464, 4294901760
    %v1944 = vsub.f32 %v1464, %v1943
    %v1945 = vand.u32 %v1944, 4294901760
    %1946 = vmatpush1.msra.mxu0 %v1945
    %1947 = vmatprep.subr.mxu0 0.0
    %v1948 = vand.u32 %v1465, 4294901760
    %v1949 = vsub.f32 %v1465, %v1948
    %v1950 = vand.u32 %v1949, 4294901760
    %1951 = vmatpush1.msra.mxu0 %v1950
    %1952 = vmatprep.subr.mxu0 0.0
    %v1953 = vand.u32 %v1466, 4294901760
    %v1954 = vsub.f32 %v1466, %v1953
    %v1955 = vand.u32 %v1954, 4294901760
    %1956 = vmatpush1.msra.mxu0 %v1955
    %1957 = vmatprep.subr.mxu0 0.0
    %v1958 = vand.u32 %v1467, 4294901760
    %v1959 = vsub.f32 %v1467, %v1958
    %v1960 = vand.u32 %v1959, 4294901760
    %1961 = vmatpush1.msra.mxu0 %v1960
    %1962 = vmatprep.subr.mxu0 0.0
    %v1963 = vand.u32 %v1468, 4294901760
    %v1964 = vsub.f32 %v1468, %v1963
    %v1965 = vand.u32 %v1964, 4294901760
    %1966 = vmatpush1.msra.mxu0 %v1965
    %1967 = vmatprep.subr.mxu0 0.0
    %v1968 = vand.u32 %v1469, 4294901760
    %v1969 = vsub.f32 %v1469, %v1968
    %v1970 = vand.u32 %v1969, 4294901760
    %1971 = vmatpush1.msra.mxu0 %v1970
    %1972 = vmatprep.subr.mxu0 0.0
    %v1973 = vand.u32 %v1470, 4294901760
    %v1974 = vsub.f32 %v1470, %v1973
    %v1975 = vand.u32 %v1974, 4294901760
    %1976 = vmatpush1.msra.mxu0 %v1975
    %1977 = vmatprep.subr.mxu0 0.0
    %v1978 = vand.u32 %v1471, 4294901760
    %v1979 = vsub.f32 %v1471, %v1978
    %v1980 = vand.u32 %v1979, 4294901760
    %1981 = vmatpush1.msra.mxu0 %v1980
    %1982 = vmatprep.subr.mxu0 0.0
    %v1983 = vand.u32 %v1472, 4294901760
    %v1984 = vsub.f32 %v1472, %v1983
    %v1985 = vand.u32 %v1984, 4294901760
    %1986 = vmatpush1.msra.mxu0 %v1985
    %1987 = vmatprep.subr.mxu0 0.0
    %v1988 = vand.u32 %v1473, 4294901760
    %v1989 = vsub.f32 %v1473, %v1988
    %v1990 = vand.u32 %v1989, 4294901760
    %1991 = vmatpush1.msra.mxu0 %v1990
    %1992 = vmatprep.subr.mxu0 0.0
    %v1993 = vand.u32 %v1474, 4294901760
    %v1994 = vsub.f32 %v1474, %v1993
    %v1995 = vand.u32 %v1994, 4294901760
    %1996 = vmatpush1.msra.mxu0 %v1995
    %1997 = vmatprep.subr.mxu0 0.0
    %v1998 = vand.u32 %v1475, 4294901760
    %v1999 = vsub.f32 %v1475, %v1998
    %v2000 = vand.u32 %v1999, 4294901760
    %2001 = vmatpush1.msra.mxu0 %v2000
    %2002 = vmatprep.subr.mxu0 0.0
    %v2003 = vand.u32 %v1476, 4294901760
    %v2004 = vsub.f32 %v1476, %v2003
    %v2005 = vand.u32 %v2004, 4294901760
    %2006 = vmatpush1.msra.mxu0 %v2005
    %2007 = vmatprep.subr.mxu0 0.0
    %v2008 = vand.u32 %v1477, 4294901760
    %v2009 = vsub.f32 %v1477, %v2008
    %v2010 = vand.u32 %v2009, 4294901760
    %2011 = vmatpush1.msra.mxu0 %v2010
    %2012 = vmatprep.subr.mxu0 0.0
    %2013 = vmatpush1.msra.mxu0 0.0
    %2014 = vmatprep.subr.mxu0 0.0
    %2015 = vmatpush1.msra.mxu0 0.0
    %2016 = vmatprep.subr.mxu0 0.0
    %2017 = vmatpush1.msra.mxu0 0.0
    %2018 = vmatprep.subr.mxu0 0.0
    %2019 = vmatpush1.msra.mxu0 0.0
    %2020 = vmatprep.subr.mxu0 0.0
    %2021 = vmatpush1.msra.mxu0 0.0
    %2022 = vmatprep.subr.mxu0 0.0
    %2023 = vmatpush1.msra.mxu0 0.0
    %2024 = vmatprep.subr.mxu0 0.0
    %2025 = vmatpush1.msra.mxu0 0.0
    %2026 = vmatprep.subr.mxu0 0.0
    %2027 = vmatpush1.msra.mxu0 0.0
    %2028 = vmatprep.subr.mxu0 0.0
    %2029 = vmatpush1.msra.mxu0 0.0
    %2030 = vmatprep.subr.mxu0 0.0
    %2031 = vmatpush1.msra.mxu0 0.0
    %2032 = vmatprep.subr.mxu0 0.0
    %2033 = vmatpush1.msra.mxu0 0.0
    %2034 = vmatprep.subr.mxu0 0.0
    %2035 = vmatpush1.msra.mxu0 0.0
    %2036 = vmatprep.subr.mxu0 0.0
    %2037 = vmatpush1.msra.mxu0 0.0
    %2038 = vmatprep.subr.mxu0 0.0
    %2039 = vmatpush1.msra.mxu0 0.0
    %2040 = vmatprep.subr.mxu0 0.0
    %2041 = vmatpush1.msra.mxu0 0.0
    %2042 = vmatprep.subr.mxu0 0.0
    %2043 = vmatpush1.msra.mxu0 0.0
    %2044 = vmatprep.mubr.f32.mxu0 0.0
    %v2045 = vand.u32 %v1494, 4294901760
    %2046 = vmatmul.mubr.f32.gmra.mrb[0].mxu0 %v2045
    %v2047 = vpop.f32.mrb[0].mxu0
    %v2048 = vadd.f32 %v1929, %v2047
    %v2049 = vpop.f32.mrb[0].mxu0
    %2050 = vdwg.mxu0
    %2051 = vmatprep.subr.mxu0 0.0
    %v2052 = vand.u32 %v1462, 4294901760
    %2053 = vmatpush1.msra.mxu0 %v2052
    %2054 = vmatprep.subr.mxu0 0.0
    %v2055 = vand.u32 %v1463, 4294901760
    %2056 = vmatpush1.msra.mxu0 %v2055
    %2057 = vmatprep.subr.mxu0 0.0
    %v2058 = vand.u32 %v1464, 4294901760
    %2059 = vmatpush1.msra.mxu0 %v2058
    %2060 = vmatprep.subr.mxu0 0.0
    %v2061 = vand.u32 %v1465, 4294901760
    %2062 = vmatpush1.msra.mxu0 %v2061
    %2063 = vmatprep.subr.mxu0 0.0
    %v2064 = vand.u32 %v1466, 4294901760
    %2065 = vmatpush1.msra.mxu0 %v2064
    %2066 = vmatprep.subr.mxu0 0.0
    %v2067 = vand.u32 %v1467, 4294901760
    %2068 = vmatpush1.msra.mxu0 %v2067
    %2069 = vmatprep.subr.mxu0 0.0
    %v2070 = vand.u32 %v1468, 4294901760
    %2071 = vmatpush1.msra.mxu0 %v2070
    %2072 = vmatprep.subr.mxu0 0.0
    %v2073 = vand.u32 %v1469, 4294901760
    %2074 = vmatpush1.msra.mxu0 %v2073
    %2075 = vmatprep.subr.mxu0 0.0
    %v2076 = vand.u32 %v1470, 4294901760
    %2077 = vmatpush1.msra.mxu0 %v2076
    %2078 = vmatprep.subr.mxu0 0.0
    %v2079 = vand.u32 %v1471, 4294901760
    %2080 = vmatpush1.msra.mxu0 %v2079
    %2081 = vmatprep.subr.mxu0 0.0
    %v2082 = vand.u32 %v1472, 4294901760
    %2083 = vmatpush1.msra.mxu0 %v2082
    %2084 = vmatprep.subr.mxu0 0.0
    %v2085 = vand.u32 %v1473, 4294901760
    %2086 = vmatpush1.msra.mxu0 %v2085
    %2087 = vmatprep.subr.mxu0 0.0
    %v2088 = vand.u32 %v1474, 4294901760
    %2089 = vmatpush1.msra.mxu0 %v2088
    %2090 = vmatprep.subr.mxu0 0.0
    %v2091 = vand.u32 %v1475, 4294901760
    %2092 = vmatpush1.msra.mxu0 %v2091
    %2093 = vmatprep.subr.mxu0 0.0
    %v2094 = vand.u32 %v1476, 4294901760
    %2095 = vmatpush1.msra.mxu0 %v2094
    %2096 = vmatprep.subr.mxu0 0.0
    %v2097 = vand.u32 %v1477, 4294901760
    %2098 = vmatpush1.msra.mxu0 %v2097
    %2099 = vmatprep.subr.mxu0 0.0
    %2100 = vmatpush1.msra.mxu0 0.0
    %2101 = vmatprep.subr.mxu0 0.0
    %2102 = vmatpush1.msra.mxu0 0.0
    %2103 = vmatprep.subr.mxu0 0.0
    %2104 = vmatpush1.msra.mxu0 0.0
    %2105 = vmatprep.subr.mxu0 0.0
    %2106 = vmatpush1.msra.mxu0 0.0
    %2107 = vmatprep.subr.mxu0 0.0
    %2108 = vmatpush1.msra.mxu0 0.0
    %2109 = vmatprep.subr.mxu0 0.0
    %2110 = vmatpush1.msra.mxu0 0.0
    %2111 = vmatprep.subr.mxu0 0.0
    %2112 = vmatpush1.msra.mxu0 0.0
    %2113 = vmatprep.subr.mxu0 0.0
    %2114 = vmatpush1.msra.mxu0 0.0
    %2115 = vmatprep.subr.mxu0 0.0
    %2116 = vmatpush1.msra.mxu0 0.0
    %2117 = vmatprep.subr.mxu0 0.0
    %2118 = vmatpush1.msra.mxu0 0.0
    %2119 = vmatprep.subr.mxu0 0.0
    %2120 = vmatpush1.msra.mxu0 0.0
    %2121 = vmatprep.subr.mxu0 0.0
    %2122 = vmatpush1.msra.mxu0 0.0
    %2123 = vmatprep.subr.mxu0 0.0
    %2124 = vmatpush1.msra.mxu0 0.0
    %2125 = vmatprep.subr.mxu0 0.0
    %2126 = vmatpush1.msra.mxu0 0.0
    %2127 = vmatprep.subr.mxu0 0.0
    %2128 = vmatpush1.msra.mxu0 0.0
    %2129 = vmatprep.subr.mxu0 0.0
    %2130 = vmatpush1.msra.mxu0 0.0
    %2131 = vmatprep.mubr.f32.mxu0 0.0
    %v2132 = vand.u32 %v1494, 4294901760
    %2133 = vmatmul.mubr.f32.gmra.mrb[0].mxu0 %v2132
    %v2134 = vpop.f32.mrb[0].mxu0
    %v2135 = vadd.f32 %v2048, %v2134
    %v2136 = vpop.f32.mrb[0].mxu0
    %2137 = vdwg.mxu0
    %v2138 = vadd.f32 %v1496, %v2135
    %2139 = vst [vmem:[#allocation2] sm:$0xff] %v2138
    %v2140 = vld [vmem:[#allocation4] sm:$0xff]
    %2141 = vmatprep.subr.mxu0 0.0
    %v2142 = vand.u32 %v1478, 4294901760
    %2143 = vmatpush1.msra.mxu0 %v2142
    %2144 = vmatprep.subr.mxu0 0.0
    %v2145 = vand.u32 %v1479, 4294901760
    %2146 = vmatpush1.msra.mxu0 %v2145
    %2147 = vmatprep.subr.mxu0 0.0
    %v2148 = vand.u32 %v1480, 4294901760
    %2149 = vmatpush1.msra.mxu0 %v2148
    %2150 = vmatprep.subr.mxu0 0.0
    %v2151 = vand.u32 %v1481, 4294901760
    %2152 = vmatpush1.msra.mxu0 %v2151
    %2153 = vmatprep.subr.mxu0 0.0
    %v2154 = vand.u32 %v1482, 4294901760
    %2155 = vmatpush1.msra.mxu0 %v2154
    %2156 = vmatprep.subr.mxu0 0.0
    %v2157 = vand.u32 %v1483, 4294901760
    %2158 = vmatpush1.msra.mxu0 %v2157
    %2159 = vmatprep.subr.mxu0 0.0
    %v2160 = vand.u32 %v1484, 4294901760
    %2161 = vmatpush1.msra.mxu0 %v2160
    %2162 = vmatprep.subr.mxu0 0.0
    %v2163 = vand.u32 %v1485, 4294901760
    %2164 = vmatpush1.msra.mxu0 %v2163
    %2165 = vmatprep.subr.mxu0 0.0
    %v2166 = vand.u32 %v1486, 4294901760
    %2167 = vmatpush1.msra.mxu0 %v2166
    %2168 = vmatprep.subr.mxu0 0.0
    %v2169 = vand.u32 %v1487, 4294901760
    %2170 = vmatpush1.msra.mxu0 %v2169
    %2171 = vmatprep.subr.mxu0 0.0
    %v2172 = vand.u32 %v1488, 4294901760
    %2173 = vmatpush1.msra.mxu0 %v2172
    %2174 = vmatprep.subr.mxu0 0.0
    %v2175 = vand.u32 %v1489, 4294901760
    %2176 = vmatpush1.msra.mxu0 %v2175
    %2177 = vmatprep.subr.mxu0 0.0
    %v2178 = vand.u32 %v1490, 4294901760
    %2179 = vmatpush1.msra.mxu0 %v2178
    %2180 = vmatprep.subr.mxu0 0.0
    %v2181 = vand.u32 %v1491, 4294901760
    %2182 = vmatpush1.msra.mxu0 %v2181
    %2183 = vmatprep.subr.mxu0 0.0
    %v2184 = vand.u32 %v1492, 4294901760
    %2185 = vmatpush1.msra.mxu0 %v2184
    %2186 = vmatprep.subr.mxu0 0.0
    %v2187 = vand.u32 %v1493, 4294901760
    %2188 = vmatpush1.msra.mxu0 %v2187
    %2189 = vmatprep.subr.mxu0 0.0
    %2190 = vmatpush1.msra.mxu0 0.0
    %2191 = vmatprep.subr.mxu0 0.0
    %2192 = vmatpush1.msra.mxu0 0.0
    %2193 = vmatprep.subr.mxu0 0.0
    %2194 = vmatpush1.msra.mxu0 0.0
    %2195 = vmatprep.subr.mxu0 0.0
    %2196 = vmatpush1.msra.mxu0 0.0
    %2197 = vmatprep.subr.mxu0 0.0
    %2198 = vmatpush1.msra.mxu0 0.0
    %2199 = vmatprep.subr.mxu0 0.0
    %2200 = vmatpush1.msra.mxu0 0.0
    %2201 = vmatprep.subr.mxu0 0.0
    %2202 = vmatpush1.msra.mxu0 0.0
    %2203 = vmatprep.subr.mxu0 0.0
    %2204 = vmatpush1.msra.mxu0 0.0
    %2205 = vmatprep.subr.mxu0 0.0
    %2206 = vmatpush1.msra.mxu0 0.0
    %2207 = vmatprep.subr.mxu0 0.0
    %2208 = vmatpush1.msra.mxu0 0.0
    %2209 = vmatprep.subr.mxu0 0.0
    %2210 = vmatpush1.msra.mxu0 0.0
    %2211 = vmatprep.subr.mxu0 0.0
    %2212 = vmatpush1.msra.mxu0 0.0
    %2213 = vmatprep.subr.mxu0 0.0
    %2214 = vmatpush1.msra.mxu0 0.0
    %2215 = vmatprep.subr.mxu0 0.0
    %2216 = vmatpush1.msra.mxu0 0.0
    %2217 = vmatprep.subr.mxu0 0.0
    %2218 = vmatpush1.msra.mxu0 0.0
    %2219 = vmatprep.subr.mxu0 0.0
    %2220 = vmatpush1.msra.mxu0 0.0
    %2221 = vmatprep.mubr.f32.mxu0 0.0
    %v2222 = vand.u32 %v1495, 4294901760
    %v2223 = vsub.f32 %v1495, %v2222
    %v2224 = vand.u32 %v2223, 4294901760
    %v2225 = vsub.f32 %v2223, %v2224
    %v2226 = vand.u32 %v2225, 4294901760
    %2227 = vmatmul.mubr.f32.gmra.mrb[0].mxu0 %v2226
    %v2228 = vpop.f32.mrb[0].mxu0
    %v2229 = vadd.f32 0.0, %v2228
    %v2230 = vpop.f32.mrb[0].mxu0
    %2231 = vdwg.mxu0
    %2232 = vmatprep.subr.mxu0 0.0
    %v2233 = vand.u32 %v1478, 4294901760
    %v2234 = vsub.f32 %v1478, %v2233
    %v2235 = vand.u32 %v2234, 4294901760
    %v2236 = vsub.f32 %v2234, %v2235
    %v2237 = vand.u32 %v2236, 4294901760
    %2238 = vmatpush1.msra.mxu0 %v2237
    %2239 = vmatprep.subr.mxu0 0.0
    %v2240 = vand.u32 %v1479, 4294901760
    %v2241 = vsub.f32 %v1479, %v2240
    %v2242 = vand.u32 %v2241, 4294901760
    %v2243 = vsub.f32 %v2241, %v2242
    %v2244 = vand.u32 %v2243, 4294901760
    %2245 = vmatpush1.msra.mxu0 %v2244
    %2246 = vmatprep.subr.mxu0 0.0
    %v2247 = vand.u32 %v1480, 4294901760
    %v2248 = vsub.f32 %v1480, %v2247
    %v2249 = vand.u32 %v2248, 4294901760
    %v2250 = vsub.f32 %v2248, %v2249
    %v2251 = vand.u32 %v2250, 4294901760
    %2252 = vmatpush1.msra.mxu0 %v2251
    %2253 = vmatprep.subr.mxu0 0.0
    %v2254 = vand.u32 %v1481, 4294901760
    %v2255 = vsub.f32 %v1481, %v2254
    %v2256 = vand.u32 %v2255, 4294901760
    %v2257 = vsub.f32 %v2255, %v2256
    %v2258 = vand.u32 %v2257, 4294901760
    %2259 = vmatpush1.msra.mxu0 %v2258
    %2260 = vmatprep.subr.mxu0 0.0
    %v2261 = vand.u32 %v1482, 4294901760
    %v2262 = vsub.f32 %v1482, %v2261
    %v2263 = vand.u32 %v2262, 4294901760
    %v2264 = vsub.f32 %v2262, %v2263
    %v2265 = vand.u32 %v2264, 4294901760
    %2266 = vmatpush1.msra.mxu0 %v2265
    %2267 = vmatprep.subr.mxu0 0.0
    %v2268 = vand.u32 %v1483, 4294901760
    %v2269 = vsub.f32 %v1483, %v2268
    %v2270 = vand.u32 %v2269, 4294901760
    %v2271 = vsub.f32 %v2269, %v2270
    %v2272 = vand.u32 %v2271, 4294901760
    %2273 = vmatpush1.msra.mxu0 %v2272
    %2274 = vmatprep.subr.mxu0 0.0
    %v2275 = vand.u32 %v1484, 4294901760
    %v2276 = vsub.f32 %v1484, %v2275
    %v2277 = vand.u32 %v2276, 4294901760
    %v2278 = vsub.f32 %v2276, %v2277
    %v2279 = vand.u32 %v2278, 4294901760
    %2280 = vmatpush1.msra.mxu0 %v2279
    %2281 = vmatprep.subr.mxu0 0.0
    %v2282 = vand.u32 %v1485, 4294901760
    %v2283 = vsub.f32 %v1485, %v2282
    %v2284 = vand.u32 %v2283, 4294901760
    %v2285 = vsub.f32 %v2283, %v2284
    %v2286 = vand.u32 %v2285, 4294901760
    %2287 = vmatpush1.msra.mxu0 %v2286
    %2288 = vmatprep.subr.mxu0 0.0
    %v2289 = vand.u32 %v1486, 4294901760
    %v2290 = vsub.f32 %v1486, %v2289
    %v2291 = vand.u32 %v2290, 4294901760
    %v2292 = vsub.f32 %v2290, %v2291
    %v2293 = vand.u32 %v2292, 4294901760
    %2294 = vmatpush1.msra.mxu0 %v2293
    %2295 = vmatprep.subr.mxu0 0.0
    %v2296 = vand.u32 %v1487, 4294901760
    %v2297 = vsub.f32 %v1487, %v2296
    %v2298 = vand.u32 %v2297, 4294901760
    %v2299 = vsub.f32 %v2297, %v2298
    %v2300 = vand.u32 %v2299, 4294901760
    %2301 = vmatpush1.msra.mxu0 %v2300
    %2302 = vmatprep.subr.mxu0 0.0
    %v2303 = vand.u32 %v1488, 4294901760
    %v2304 = vsub.f32 %v1488, %v2303
    %v2305 = vand.u32 %v2304, 4294901760
    %v2306 = vsub.f32 %v2304, %v2305
    %v2307 = vand.u32 %v2306, 4294901760
    %2308 = vmatpush1.msra.mxu0 %v2307
    %2309 = vmatprep.subr.mxu0 0.0
    %v2310 = vand.u32 %v1489, 4294901760
    %v2311 = vsub.f32 %v1489, %v2310
    %v2312 = vand.u32 %v2311, 4294901760
    %v2313 = vsub.f32 %v2311, %v2312
    %v2314 = vand.u32 %v2313, 4294901760
    %2315 = vmatpush1.msra.mxu0 %v2314
    %2316 = vmatprep.subr.mxu0 0.0
    %v2317 = vand.u32 %v1490, 4294901760
    %v2318 = vsub.f32 %v1490, %v2317
    %v2319 = vand.u32 %v2318, 4294901760
    %v2320 = vsub.f32 %v2318, %v2319
    %v2321 = vand.u32 %v2320, 4294901760
    %2322 = vmatpush1.msra.mxu0 %v2321
    %2323 = vmatprep.subr.mxu0 0.0
    %v2324 = vand.u32 %v1491, 4294901760
    %v2325 = vsub.f32 %v1491, %v2324
    %v2326 = vand.u32 %v2325, 4294901760
    %v2327 = vsub.f32 %v2325, %v2326
    %v2328 = vand.u32 %v2327, 4294901760
    %2329 = vmatpush1.msra.mxu0 %v2328
    %2330 = vmatprep.subr.mxu0 0.0
    %v2331 = vand.u32 %v1492, 4294901760
    %v2332 = vsub.f32 %v1492, %v2331
    %v2333 = vand.u32 %v2332, 4294901760
    %v2334 = vsub.f32 %v2332, %v2333
    %v2335 = vand.u32 %v2334, 4294901760
    %2336 = vmatpush1.msra.mxu0 %v2335
    %2337 = vmatprep.subr.mxu0 0.0
    %v2338 = vand.u32 %v1493, 4294901760
    %v2339 = vsub.f32 %v1493, %v2338
    %v2340 = vand.u32 %v2339, 4294901760
    %v2341 = vsub.f32 %v2339, %v2340
    %v2342 = vand.u32 %v2341, 4294901760
    %2343 = vmatpush1.msra.mxu0 %v2342
    %2344 = vmatprep.subr.mxu0 0.0
    %2345 = vmatpush1.msra.mxu0 0.0
    %2346 = vmatprep.subr.mxu0 0.0
    %2347 = vmatpush1.msra.mxu0 0.0
    %2348 = vmatprep.subr.mxu0 0.0
    %2349 = vmatpush1.msra.mxu0 0.0
    %2350 = vmatprep.subr.mxu0 0.0
    %2351 = vmatpush1.msra.mxu0 0.0
    %2352 = vmatprep.subr.mxu0 0.0
    %2353 = vmatpush1.msra.mxu0 0.0
    %2354 = vmatprep.subr.mxu0 0.0
    %2355 = vmatpush1.msra.mxu0 0.0
    %2356 = vmatprep.subr.mxu0 0.0
    %2357 = vmatpush1.msra.mxu0 0.0
    %2358 = vmatprep.subr.mxu0 0.0
    %2359 = vmatpush1.msra.mxu0 0.0
    %2360 = vmatprep.subr.mxu0 0.0
    %2361 = vmatpush1.msra.mxu0 0.0
    %2362 = vmatprep.subr.mxu0 0.0
    %2363 = vmatpush1.msra.mxu0 0.0
    %2364 = vmatprep.subr.mxu0 0.0
    %2365 = vmatpush1.msra.mxu0 0.0
    %2366 = vmatprep.subr.mxu0 0.0
    %2367 = vmatpush1.msra.mxu0 0.0
    %2368 = vmatprep.subr.mxu0 0.0
    %2369 = vmatpush1.msra.mxu0 0.0
    %2370 = vmatprep.subr.mxu0 0.0
    %2371 = vmatpush1.msra.mxu0 0.0
    %2372 = vmatprep.subr.mxu0 0.0
    %2373 = vmatpush1.msra.mxu0 0.0
    %2374 = vmatprep.subr.mxu0 0.0
    %2375 = vmatpush1.msra.mxu0 0.0
    %2376 = vmatprep.mubr.f32.mxu0 0.0
    %v2377 = vand.u32 %v1495, 4294901760
    %2378 = vmatmul.mubr.f32.gmra.mrb[0].mxu0 %v2377
    %v2379 = vpop.f32.mrb[0].mxu0
    %v2380 = vadd.f32 %v2229, %v2379
    %v2381 = vpop.f32.mrb[0].mxu0
    %2382 = vdwg.mxu0
    %2383 = vmatprep.subr.mxu0 0.0
    %v2384 = vand.u32 %v1478, 4294901760
    %v2385 = vsub.f32 %v1478, %v2384
    %2386 = vmatpush1.msra.mxu0 %v2385
    %2387 = vmatprep.subr.mxu0 0.0
    %v2388 = vand.u32 %v1479, 4294901760
    %v2389 = vsub.f32 %v1479, %v2388
    %2390 = vmatpush1.msra.mxu0 %v2389
    %2391 = vmatprep.subr.mxu0 0.0
    %v2392 = vand.u32 %v1480, 4294901760
    %v2393 = vsub.f32 %v1480, %v2392
    %2394 = vmatpush1.msra.mxu0 %v2393
    %2395 = vmatprep.subr.mxu0 0.0
    %v2396 = vand.u32 %v1481, 4294901760
    %v2397 = vsub.f32 %v1481, %v2396
    %2398 = vmatpush1.msra.mxu0 %v2397
    %2399 = vmatprep.subr.mxu0 0.0
    %v2400 = vand.u32 %v1482, 4294901760
    %v2401 = vsub.f32 %v1482, %v2400
    %2402 = vmatpush1.msra.mxu0 %v2401
    %2403 = vmatprep.subr.mxu0 0.0
    %v2404 = vand.u32 %v1483, 4294901760
    %v2405 = vsub.f32 %v1483, %v2404
    %2406 = vmatpush1.msra.mxu0 %v2405
    %2407 = vmatprep.subr.mxu0 0.0
    %v2408 = vand.u32 %v1484, 4294901760
    %v2409 = vsub.f32 %v1484, %v2408
    %2410 = vmatpush1.msra.mxu0 %v2409
    %2411 = vmatprep.subr.mxu0 0.0
    %v2412 = vand.u32 %v1485, 4294901760
    %v2413 = vsub.f32 %v1485, %v2412
    %2414 = vmatpush1.msra.mxu0 %v2413
    %2415 = vmatprep.subr.mxu0 0.0
    %v2416 = vand.u32 %v1486, 4294901760
    %v2417 = vsub.f32 %v1486, %v2416
    %2418 = vmatpush1.msra.mxu0 %v2417
    %2419 = vmatprep.subr.mxu0 0.0
    %v2420 = vand.u32 %v1487, 4294901760
    %v2421 = vsub.f32 %v1487, %v2420
    %2422 = vmatpush1.msra.mxu0 %v2421
    %2423 = vmatprep.subr.mxu0 0.0
    %v2424 = vand.u32 %v1488, 4294901760
    %v2425 = vsub.f32 %v1488, %v2424
    %2426 = vmatpush1.msra.mxu0 %v2425
    %2427 = vmatprep.subr.mxu0 0.0
    %v2428 = vand.u32 %v1489, 4294901760
    %v2429 = vsub.f32 %v1489, %v2428
    %2430 = vmatpush1.msra.mxu0 %v2429
    %2431 = vmatprep.subr.mxu0 0.0
    %v2432 = vand.u32 %v1490, 4294901760
    %v2433 = vsub.f32 %v1490, %v2432
    %2434 = vmatpush1.msra.mxu0 %v2433
    %2435 = vmatprep.subr.mxu0 0.0
    %v2436 = vand.u32 %v1491, 4294901760
    %v2437 = vsub.f32 %v1491, %v2436
    %2438 = vmatpush1.msra.mxu0 %v2437
    %2439 = vmatprep.subr.mxu0 0.0
    %v2440 = vand.u32 %v1492, 4294901760
    %v2441 = vsub.f32 %v1492, %v2440
    %2442 = vmatpush1.msra.mxu0 %v2441
    %2443 = vmatprep.subr.mxu0 0.0
    %v2444 = vand.u32 %v1493, 4294901760
    %v2445 = vsub.f32 %v1493, %v2444
    %2446 = vmatpush1.msra.mxu0 %v2445
    %2447 = vmatprep.subr.mxu0 0.0
    %2448 = vmatpush1.msra.mxu0 0.0
    %2449 = vmatprep.subr.mxu0 0.0
    %2450 = vmatpush1.msra.mxu0 0.0
    %2451 = vmatprep.subr.mxu0 0.0
    %2452 = vmatpush1.msra.mxu0 0.0
    %2453 = vmatprep.subr.mxu0 0.0
    %2454 = vmatpush1.msra.mxu0 0.0
    %2455 = vmatprep.subr.mxu0 0.0
    %2456 = vmatpush1.msra.mxu0 0.0
    %2457 = vmatprep.subr.mxu0 0.0
    %2458 = vmatpush1.msra.mxu0 0.0
    %2459 = vmatprep.subr.mxu0 0.0
    %2460 = vmatpush1.msra.mxu0 0.0
    %2461 = vmatprep.subr.mxu0 0.0
    %2462 = vmatpush1.msra.mxu0 0.0
    %2463 = vmatprep.subr.mxu0 0.0
    %2464 = vmatpush1.msra.mxu0 0.0
    %2465 = vmatprep.subr.mxu0 0.0
    %2466 = vmatpush1.msra.mxu0 0.0
    %2467 = vmatprep.subr.mxu0 0.0
    %2468 = vmatpush1.msra.mxu0 0.0
    %2469 = vmatprep.subr.mxu0 0.0
    %2470 = vmatpush1.msra.mxu0 0.0
    %2471 = vmatprep.subr.mxu0 0.0
    %2472 = vmatpush1.msra.mxu0 0.0
    %2473 = vmatprep.subr.mxu0 0.0
    %2474 = vmatpush1.msra.mxu0 0.0
    %2475 = vmatprep.subr.mxu0 0.0
    %2476 = vmatpush1.msra.mxu0 0.0
    %2477 = vmatprep.subr.mxu0 0.0
    %2478 = vmatpush1.msra.mxu0 0.0
    %2479 = vmatprep.mubr.f32.mxu0 0.0
    %v2480 = vand.u32 %v1495, 4294901760
    %v2481 = vsub.f32 %v1495, %v2480
    %2482 = vmatmul.mubr.f32.gmra.mrb[0].mxu0 %v2481
    %v2483 = vpop.f32.mrb[0].mxu0
    %v2484 = vadd.f32 %v2380, %v2483
    %v2485 = vpop.f32.mrb[0].mxu0
    %2486 = vdwg.mxu0
    %2487 = vmatprep.subr.mxu0 0.0
    %v2488 = vand.u32 %v1478, 4294901760
    %2489 = vmatpush1.msra.mxu0 %v2488
    %2490 = vmatprep.subr.mxu0 0.0
    %v2491 = vand.u32 %v1479, 4294901760
    %2492 = vmatpush1.msra.mxu0 %v2491
    %2493 = vmatprep.subr.mxu0 0.0
    %v2494 = vand.u32 %v1480, 4294901760
    %2495 = vmatpush1.msra.mxu0 %v2494
    %2496 = vmatprep.subr.mxu0 0.0
    %v2497 = vand.u32 %v1481, 4294901760
    %2498 = vmatpush1.msra.mxu0 %v2497
    %2499 = vmatprep.subr.mxu0 0.0
    %v2500 = vand.u32 %v1482, 4294901760
    %2501 = vmatpush1.msra.mxu0 %v2500
    %2502 = vmatprep.subr.mxu0 0.0
    %v2503 = vand.u32 %v1483, 4294901760
    %2504 = vmatpush1.msra.mxu0 %v2503
    %2505 = vmatprep.subr.mxu0 0.0
    %v2506 = vand.u32 %v1484, 4294901760
    %2507 = vmatpush1.msra.mxu0 %v2506
    %2508 = vmatprep.subr.mxu0 0.0
    %v2509 = vand.u32 %v1485, 4294901760
    %2510 = vmatpush1.msra.mxu0 %v2509
    %2511 = vmatprep.subr.mxu0 0.0
    %v2512 = vand.u32 %v1486, 4294901760
    %2513 = vmatpush1.msra.mxu0 %v2512
    %2514 = vmatprep.subr.mxu0 0.0
    %v2515 = vand.u32 %v1487, 4294901760
    %2516 = vmatpush1.msra.mxu0 %v2515
    %2517 = vmatprep.subr.mxu0 0.0
    %v2518 = vand.u32 %v1488, 4294901760
    %2519 = vmatpush1.msra.mxu0 %v2518
    %2520 = vmatprep.subr.mxu0 0.0
    %v2521 = vand.u32 %v1489, 4294901760
    %2522 = vmatpush1.msra.mxu0 %v2521
    %2523 = vmatprep.subr.mxu0 0.0
    %v2524 = vand.u32 %v1490, 4294901760
    %2525 = vmatpush1.msra.mxu0 %v2524
    %2526 = vmatprep.subr.mxu0 0.0
    %v2527 = vand.u32 %v1491, 4294901760
    %2528 = vmatpush1.msra.mxu0 %v2527
    %2529 = vmatprep.subr.mxu0 0.0
    %v2530 = vand.u32 %v1492, 4294901760
    %2531 = vmatpush1.msra.mxu0 %v2530
    %2532 = vmatprep.subr.mxu0 0.0
    %v2533 = vand.u32 %v1493, 4294901760
    %2534 = vmatpush1.msra.mxu0 %v2533
    %2535 = vmatprep.subr.mxu0 0.0
    %2536 = vmatpush1.msra.mxu0 0.0
    %2537 = vmatprep.subr.mxu0 0.0
    %2538 = vmatpush1.msra.mxu0 0.0
    %2539 = vmatprep.subr.mxu0 0.0
    %2540 = vmatpush1.msra.mxu0 0.0
    %2541 = vmatprep.subr.mxu0 0.0
    %2542 = vmatpush1.msra.mxu0 0.0
    %2543 = vmatprep.subr.mxu0 0.0
    %2544 = vmatpush1.msra.mxu0 0.0
    %2545 = vmatprep.subr.mxu0 0.0
    %2546 = vmatpush1.msra.mxu0 0.0
    %2547 = vmatprep.subr.mxu0 0.0
    %2548 = vmatpush1.msra.mxu0 0.0
    %2549 = vmatprep.subr.mxu0 0.0
    %2550 = vmatpush1.msra.mxu0 0.0
    %2551 = vmatprep.subr.mxu0 0.0
    %2552 = vmatpush1.msra.mxu0 0.0
    %2553 = vmatprep.subr.mxu0 0.0
    %2554 = vmatpush1.msra.mxu0 0.0
    %2555 = vmatprep.subr.mxu0 0.0
    %2556 = vmatpush1.msra.mxu0 0.0
    %2557 = vmatprep.subr.mxu0 0.0
    %2558 = vmatpush1.msra.mxu0 0.0
    %2559 = vmatprep.subr.mxu0 0.0
    %2560 = vmatpush1.msra.mxu0 0.0
    %2561 = vmatprep.subr.mxu0 0.0
    %2562 = vmatpush1.msra.mxu0 0.0
    %2563 = vmatprep.subr.mxu0 0.0
    %2564 = vmatpush1.msra.mxu0 0.0
    %2565 = vmatprep.subr.mxu0 0.0
    %2566 = vmatpush1.msra.mxu0 0.0
    %2567 = vmatprep.mubr.f32.mxu0 0.0
    %v2568 = vand.u32 %v1495, 4294901760
    %v2569 = vsub.f32 %v1495, %v2568
    %v2570 = vand.u32 %v2569, 4294901760
    %2571 = vmatmul.mubr.f32.gmra.mrb[0].mxu0 %v2570
    %v2572 = vpop.f32.mrb[0].mxu0
    %v2573 = vadd.f32 %v2484, %v2572
    %v2574 = vpop.f32.mrb[0].mxu0
    %2575 = vdwg.mxu0
    %2576 = vmatprep.subr.mxu0 0.0
    %v2577 = vand.u32 %v1478, 4294901760
    %v2578 = vsub.f32 %v1478, %v2577
    %v2579 = vand.u32 %v2578, 4294901760
    %2580 = vmatpush1.msra.mxu0 %v2579
    %2581 = vmatprep.subr.mxu0 0.0
    %v2582 = vand.u32 %v1479, 4294901760
    %v2583 = vsub.f32 %v1479, %v2582
    %v2584 = vand.u32 %v2583, 4294901760
    %2585 = vmatpush1.msra.mxu0 %v2584
    %2586 = vmatprep.subr.mxu0 0.0
    %v2587 = vand.u32 %v1480, 4294901760
    %v2588 = vsub.f32 %v1480, %v2587
    %v2589 = vand.u32 %v2588, 4294901760
    %2590 = vmatpush1.msra.mxu0 %v2589
    %2591 = vmatprep.subr.mxu0 0.0
    %v2592 = vand.u32 %v1481, 4294901760
    %v2593 = vsub.f32 %v1481, %v2592
    %v2594 = vand.u32 %v2593, 4294901760
    %2595 = vmatpush1.msra.mxu0 %v2594
    %2596 = vmatprep.subr.mxu0 0.0
    %v2597 = vand.u32 %v1482, 4294901760
    %v2598 = vsub.f32 %v1482, %v2597
    %v2599 = vand.u32 %v2598, 4294901760
    %2600 = vmatpush1.msra.mxu0 %v2599
    %2601 = vmatprep.subr.mxu0 0.0
    %v2602 = vand.u32 %v1483, 4294901760
    %v2603 = vsub.f32 %v1483, %v2602
    %v2604 = vand.u32 %v2603, 4294901760
    %2605 = vmatpush1.msra.mxu0 %v2604
    %2606 = vmatprep.subr.mxu0 0.0
    %v2607 = vand.u32 %v1484, 4294901760
    %v2608 = vsub.f32 %v1484, %v2607
    %v2609 = vand.u32 %v2608, 4294901760
    %2610 = vmatpush1.msra.mxu0 %v2609
    %2611 = vmatprep.subr.mxu0 0.0
    %v2612 = vand.u32 %v1485, 4294901760
    %v2613 = vsub.f32 %v1485, %v2612
    %v2614 = vand.u32 %v2613, 4294901760
    %2615 = vmatpush1.msra.mxu0 %v2614
    %2616 = vmatprep.subr.mxu0 0.0
    %v2617 = vand.u32 %v1486, 4294901760
    %v2618 = vsub.f32 %v1486, %v2617
    %v2619 = vand.u32 %v2618, 4294901760
    %2620 = vmatpush1.msra.mxu0 %v2619
    %2621 = vmatprep.subr.mxu0 0.0
    %v2622 = vand.u32 %v1487, 4294901760
    %v2623 = vsub.f32 %v1487, %v2622
    %v2624 = vand.u32 %v2623, 4294901760
    %2625 = vmatpush1.msra.mxu0 %v2624
    %2626 = vmatprep.subr.mxu0 0.0
    %v2627 = vand.u32 %v1488, 4294901760
    %v2628 = vsub.f32 %v1488, %v2627
    %v2629 = vand.u32 %v2628, 4294901760
    %2630 = vmatpush1.msra.mxu0 %v2629
    %2631 = vmatprep.subr.mxu0 0.0
    %v2632 = vand.u32 %v1489, 4294901760
    %v2633 = vsub.f32 %v1489, %v2632
    %v2634 = vand.u32 %v2633, 4294901760
    %2635 = vmatpush1.msra.mxu0 %v2634
    %2636 = vmatprep.subr.mxu0 0.0
    %v2637 = vand.u32 %v1490, 4294901760
    %v2638 = vsub.f32 %v1490, %v2637
    %v2639 = vand.u32 %v2638, 4294901760
    %2640 = vmatpush1.msra.mxu0 %v2639
    %2641 = vmatprep.subr.mxu0 0.0
    %v2642 = vand.u32 %v1491, 4294901760
    %v2643 = vsub.f32 %v1491, %v2642
    %v2644 = vand.u32 %v2643, 4294901760
    %2645 = vmatpush1.msra.mxu0 %v2644
    %2646 = vmatprep.subr.mxu0 0.0
    %v2647 = vand.u32 %v1492, 4294901760
    %v2648 = vsub.f32 %v1492, %v2647
    %v2649 = vand.u32 %v2648, 4294901760
    %2650 = vmatpush1.msra.mxu0 %v2649
    %2651 = vmatprep.subr.mxu0 0.0
    %v2652 = vand.u32 %v1493, 4294901760
    %v2653 = vsub.f32 %v1493, %v2652
    %v2654 = vand.u32 %v2653, 4294901760
    %2655 = vmatpush1.msra.mxu0 %v2654
    %2656 = vmatprep.subr.mxu0 0.0
    %2657 = vmatpush1.msra.mxu0 0.0
    %2658 = vmatprep.subr.mxu0 0.0
    %2659 = vmatpush1.msra.mxu0 0.0
    %2660 = vmatprep.subr.mxu0 0.0
    %2661 = vmatpush1.msra.mxu0 0.0
    %2662 = vmatprep.subr.mxu0 0.0
    %2663 = vmatpush1.msra.mxu0 0.0
    %2664 = vmatprep.subr.mxu0 0.0
    %2665 = vmatpush1.msra.mxu0 0.0
    %2666 = vmatprep.subr.mxu0 0.0
    %2667 = vmatpush1.msra.mxu0 0.0
    %2668 = vmatprep.subr.mxu0 0.0
    %2669 = vmatpush1.msra.mxu0 0.0
    %2670 = vmatprep.subr.mxu0 0.0
    %2671 = vmatpush1.msra.mxu0 0.0
    %2672 = vmatprep.subr.mxu0 0.0
    %2673 = vmatpush1.msra.mxu0 0.0
    %2674 = vmatprep.subr.mxu0 0.0
    %2675 = vmatpush1.msra.mxu0 0.0
    %2676 = vmatprep.subr.mxu0 0.0
    %2677 = vmatpush1.msra.mxu0 0.0
    %2678 = vmatprep.subr.mxu0 0.0
    %2679 = vmatpush1.msra.mxu0 0.0
    %2680 = vmatprep.subr.mxu0 0.0
    %2681 = vmatpush1.msra.mxu0 0.0
    %2682 = vmatprep.subr.mxu0 0.0
    %2683 = vmatpush1.msra.mxu0 0.0
    %2684 = vmatprep.subr.mxu0 0.0
    %2685 = vmatpush1.msra.mxu0 0.0
    %2686 = vmatprep.subr.mxu0 0.0
    %2687 = vmatpush1.msra.mxu0 0.0
    %2688 = vmatprep.mubr.f32.mxu0 0.0
    %v2689 = vand.u32 %v1495, 4294901760
    %2690 = vmatmul.mubr.f32.gmra.mrb[0].mxu0 %v2689
    %v2691 = vpop.f32.mrb[0].mxu0
    %v2692 = vadd.f32 %v2573, %v2691
    %v2693 = vpop.f32.mrb[0].mxu0
    %2694 = vdwg.mxu0
    %2695 = vmatprep.subr.mxu0 0.0
    %v2696 = vand.u32 %v1478, 4294901760
    %2697 = vmatpush1.msra.mxu0 %v2696
    %2698 = vmatprep.subr.mxu0 0.0
    %v2699 = vand.u32 %v1479, 4294901760
    %2700 = vmatpush1.msra.mxu0 %v2699
    %2701 = vmatprep.subr.mxu0 0.0
    %v2702 = vand.u32 %v1480, 4294901760
    %2703 = vmatpush1.msra.mxu0 %v2702
    %2704 = vmatprep.subr.mxu0 0.0
    %v2705 = vand.u32 %v1481, 4294901760
    %2706 = vmatpush1.msra.mxu0 %v2705
    %2707 = vmatprep.subr.mxu0 0.0
    %v2708 = vand.u32 %v1482, 4294901760
    %2709 = vmatpush1.msra.mxu0 %v2708
    %2710 = vmatprep.subr.mxu0 0.0
    %v2711 = vand.u32 %v1483, 4294901760
    %2712 = vmatpush1.msra.mxu0 %v2711
    %2713 = vmatprep.subr.mxu0 0.0
    %v2714 = vand.u32 %v1484, 4294901760
    %2715 = vmatpush1.msra.mxu0 %v2714
    %2716 = vmatprep.subr.mxu0 0.0
    %v2717 = vand.u32 %v1485, 4294901760
    %2718 = vmatpush1.msra.mxu0 %v2717
    %2719 = vmatprep.subr.mxu0 0.0
    %v2720 = vand.u32 %v1486, 4294901760
    %2721 = vmatpush1.msra.mxu0 %v2720
    %2722 = vmatprep.subr.mxu0 0.0
    %v2723 = vand.u32 %v1487, 4294901760
    %2724 = vmatpush1.msra.mxu0 %v2723
    %2725 = vmatprep.subr.mxu0 0.0
    %v2726 = vand.u32 %v1488, 4294901760
    %2727 = vmatpush1.msra.mxu0 %v2726
    %2728 = vmatprep.subr.mxu0 0.0
    %v2729 = vand.u32 %v1489, 4294901760
    %2730 = vmatpush1.msra.mxu0 %v2729
    %2731 = vmatprep.subr.mxu0 0.0
    %v2732 = vand.u32 %v1490, 4294901760
    %2733 = vmatpush1.msra.mxu0 %v2732
    %2734 = vmatprep.subr.mxu0 0.0
    %v2735 = vand.u32 %v1491, 4294901760
    %2736 = vmatpush1.msra.mxu0 %v2735
    %2737 = vmatprep.subr.mxu0 0.0
    %v2738 = vand.u32 %v1492, 4294901760
    %2739 = vmatpush1.msra.mxu0 %v2738
    %2740 = vmatprep.subr.mxu0 0.0
    %v2741 = vand.u32 %v1493, 4294901760
    %2742 = vmatpush1.msra.mxu0 %v2741
    %2743 = vmatprep.subr.mxu0 0.0
    %2744 = vmatpush1.msra.mxu0 0.0
    %2745 = vmatprep.subr.mxu0 0.0
    %2746 = vmatpush1.msra.mxu0 0.0
    %2747 = vmatprep.subr.mxu0 0.0
    %2748 = vmatpush1.msra.mxu0 0.0
    %2749 = vmatprep.subr.mxu0 0.0
    %2750 = vmatpush1.msra.mxu0 0.0
    %2751 = vmatprep.subr.mxu0 0.0
    %2752 = vmatpush1.msra.mxu0 0.0
    %2753 = vmatprep.subr.mxu0 0.0
    %2754 = vmatpush1.msra.mxu0 0.0
    %2755 = vmatprep.subr.mxu0 0.0
    %2756 = vmatpush1.msra.mxu0 0.0
    %2757 = vmatprep.subr.mxu0 0.0
    %2758 = vmatpush1.msra.mxu0 0.0
    %2759 = vmatprep.subr.mxu0 0.0
    %2760 = vmatpush1.msra.mxu0 0.0
    %2761 = vmatprep.subr.mxu0 0.0
    %2762 = vmatpush1.msra.mxu0 0.0
    %2763 = vmatprep.subr.mxu0 0.0
    %2764 = vmatpush1.msra.mxu0 0.0
    %2765 = vmatprep.subr.mxu0 0.0
    %2766 = vmatpush1.msra.mxu0 0.0
    %2767 = vmatprep.subr.mxu0 0.0
    %2768 = vmatpush1.msra.mxu0 0.0
    %2769 = vmatprep.subr.mxu0 0.0
    %2770 = vmatpush1.msra.mxu0 0.0
    %2771 = vmatprep.subr.mxu0 0.0
    %2772 = vmatpush1.msra.mxu0 0.0
    %2773 = vmatprep.subr.mxu0 0.0
    %2774 = vmatpush1.msra.mxu0 0.0
    %2775 = vmatprep.mubr.f32.mxu0 0.0
    %v2776 = vand.u32 %v1495, 4294901760
    %2777 = vmatmul.mubr.f32.gmra.mrb[0].mxu0 %v2776
    %v2778 = vpop.f32.mrb[0].mxu0
    %v2779 = vadd.f32 %v2692, %v2778
    %v2780 = vpop.f32.mrb[0].mxu0
    %2781 = vdwg.mxu0
    %v2782 = vadd.f32 %v2140, %v2779
    %2783 = vst [vmem:[#allocation4] sm:$0xff] %v2782
    // Predicated region
    $region18: #{tpu_custom_call.1} parent=1 // pred_check
      _
    $region19: #{tpu_custom_call.1} parent=1 // pred_check_branch
      %2785 = sbr.rel (0) target = $region21
    $region20: #{tpu_custom_call.1} parent=1 // pred_region
      %s2787 = ssub.s32 128, 128
      %2788 = vsyncadd [#allocation3], %s2787
      %s2790 = sshll.u32 [#allocation2], 4
      %s2791 = int_to_ptr.vmem [resolvable:$true] %s2790
      %2793 = dma.vmem_to_hbm [thread:$0]  %s2791, 128, %s3, [#allocation3]
    $region21: #{tpu_custom_call.1} parent=1 // pred_fallthru
      _
    // Predicated region
    $region22: #{tpu_custom_call.1} parent=1 // pred_check
      _
    $region23: #{tpu_custom_call.1} parent=1 // pred_check_branch
      %2795 = sbr.rel (0) target = $region25
    $region24: #{tpu_custom_call.1} parent=1 // pred_region
      %s2797 = ssub.s32 128, 128
      %2798 = vsyncadd [#allocation5], %s2797
      %s2800 = sshll.u32 [#allocation4], 4
      %s2801 = int_to_ptr.vmem [resolvable:$true] %s2800
      %2803 = dma.vmem_to_hbm [thread:$0]  %s2801, 128, %s4, [#allocation5]
    $region25: #{tpu_custom_call.1} parent=1 // pred_fallthru
      _
    // Predicated region
    $region26: #{tpu_custom_call.1} parent=1 // pred_check
      _
    $region27: #{tpu_custom_call.1} parent=1 // pred_check_branch
      %2805 = sbr.rel (0) target = $region29
    $region28: #{tpu_custom_call.1} parent=1 // pred_region
      %2806 = dma.done [#allocation3], 128
    $region29: #{tpu_custom_call.1} parent=1 // pred_fallthru
      _
    // Predicated region
    $region30: #{tpu_custom_call.1} parent=1 // pred_check
      _
    $region31: #{tpu_custom_call.1} parent=1 // pred_check_branch
      %2808 = sbr.rel (0) target = $region33
    $region32: #{tpu_custom_call.1} parent=1 // pred_region
      %2809 = dma.done [#allocation5], 128
    $region33: #{tpu_custom_call.1} parent=1 // pred_fallthru
      _
    %2810 = vsyncpa [#allocation3], 1
    %2811 = vsyncpa [#allocation5], 1

</llo_original>
